<compile_context>
chip_gen: v7x
topology: tpu7x:2x2x1
jax: 0.10.0
libtpu: 0.0.40
codegen_flags: <defaults>
</compile_context>

<pallas_src>
import math
import numpy as np
import jax
import jax.numpy as jnp
from jax.experimental import pallas as pl
from jax.experimental.pallas import tpu as pltpu

# ---- model config (small, consistent with the module) ----
B = 2          # batch
S = 8          # seq len == n_ctx
E = 32         # n_embd
H = 4          # n_head
DH = E // H    # head dim
FF = 4 * E     # mlp hidden
BS = B * S     # folded batch*seq rows
EPS = 1e-5     # layer_norm_epsilon
SCALE = False  # Block(..., scale=False) default (HF GPT2Model passes scale=True)
MASKED_BIAS = -10000.0


def _gelu_new(x):
    # GPT-2 "gelu_new" (tanh approximation)
    return 0.5 * x * (1.0 + jnp.tanh(
        math.sqrt(2.0 / math.pi) * (x + 0.044715 * x * x * x)))


def _layernorm(h, g, b):
    mu = jnp.mean(h, axis=-1, keepdims=True)
    var = jnp.mean((h - mu) ** 2, axis=-1, keepdims=True)
    return (h - mu) * jax.lax.rsqrt(var + EPS) * g + b


def block_kernel(x_ref,        # (BS, E)   folded input
                 w1_ref,       # (E, 8E)   [c_attn.W | attn c_proj.W | mlp c_fc.W]
                 w2_ref,       # (4E, E)   mlp c_proj.W
                 bias_ref,     # (8, 4E)   packed gains/biases (one row each, zero padded)
                 o_ref,        # (BS, E)   output
                 attn_ref):    # (BS, E)   VMEM scratch for merged heads
    x = x_ref[...]                                          # (BS, E) f32

    # packed scale/bias rows: [g1, b1, g2, b2, ba, bp, bf, bm]
    g1 = bias_ref[0:1, 0:E]
    b1 = bias_ref[1:2, 0:E]
    g2 = bias_ref[2:3, 0:E]
    b2 = bias_ref[3:4, 0:E]
    ba = bias_ref[4:5, 0:3 * E]
    bp = bias_ref[5:6, 0:E]
    bf = bias_ref[6:7, 0:4 * E]
    bm = bias_ref[7:8, 0:E]

    # ----- ln_1 + c_attn on the full folded batch -----
    h = _layernorm(x, g1, b1)
    qkv = jnp.dot(h, w1_ref[:, 0:3 * E],
                  preferred_element_type=jnp.float32) + ba          # (BS, 3E)

    # ----- batched multi-head causal attention -----
    # build (H*B, S, DH) with index n = head*B + batch; only cheap leading-axis
    # reshapes / concats and lane slices (no minor-dim reshapes).
    def split_heads(t):                       # t: (BS, E)
        t3 = t.reshape(B, S, E)               # free leading split
        return jnp.concatenate(
            [t3[:, :, hh * DH:(hh + 1) * DH] for hh in range(H)], axis=0)

    q = split_heads(qkv[:, 0:E])              # (H*B, S, DH)
    k = split_heads(qkv[:, E:2 * E])
    v = split_heads(qkv[:, 2 * E:3 * E])

    s = jnp.einsum('nqd,nkd->nqk', q, k,
                   preferred_element_type=jnp.float32)               # (H*B, S, S)
    if SCALE:
        s = s * jnp.float32(1.0 / math.sqrt(DH))
    row = jax.lax.broadcasted_iota(jnp.int32, s.shape, 1)
    col = jax.lax.broadcasted_iota(jnp.int32, s.shape, 2)
    s = jnp.where(col <= row, s, jnp.float32(MASKED_BIAS))
    s = s - jnp.max(s, axis=-1, keepdims=True)
    p = jnp.exp(s)
    p = p * pl.reciprocal(jnp.sum(p, axis=-1, keepdims=True), approx=True)
    o = jnp.einsum('nqk,nkd->nqd', p, v,
                   preferred_element_type=jnp.float32)               # (H*B, S, DH)

    # merge heads into VMEM scratch at lane offsets (no lane concatenate)
    for hh in range(H):
        attn_ref[:, hh * DH:(hh + 1) * DH] = o[hh * B:(hh + 1) * B].reshape(BS, DH)

    # ----- attention output projection + residual -----
    a = jnp.dot(attn_ref[...], w1_ref[:, 3 * E:4 * E],
                preferred_element_type=jnp.float32) + bp
    x1 = x + a

    # ----- ln_2 + MLP + residual -----
    h2 = _layernorm(x1, g2, b2)
    hf = _gelu_new(jnp.dot(h2, w1_ref[:, 4 * E:8 * E],
                           preferred_element_type=jnp.float32) + bf)
    m = jnp.dot(hf, w2_ref[...], preferred_element_type=jnp.float32) + bm

    o_ref[...] = x1 + m


def gpt2_block(x, params):
    """x: (B, S, E) float32; params: the 12 Block parameter arrays."""
    g1, b1, wa, ba, wp, bp, g2, b2, wf, bf, wm, bm = params
    Bb, Ss, Ee = x.shape

    # ---- wrapper-side packing (cheap XLA ops, cuts 13 input DMAs to 4) ----
    w1 = jnp.concatenate([wa, wp, wf], axis=1)            # (E, 8E)
    w2 = wm                                               # (4E, E)

    def pad_row(v, width=4 * Ee):
        v = v.reshape(1, -1).astype(jnp.float32)
        return jnp.pad(v, ((0, 0), (0, width - v.shape[1])))

    bias_pack = jnp.concatenate(
        [pad_row(t) for t in (g1, b1, g2, b2, ba, bp, bf, bm)], axis=0)   # (8, 128)

    x2 = x.reshape(Bb * Ss, Ee)                           # fold batch into rows

    # Single kernel invocation, everything resident in VMEM (~60 KB total).
    # TODO(synk): at real GPT-2 sizes, reintroduce a row-tiled grid (parallel over
    # rows for v7x megacore) and bf16 MXU operands; not worth it at this size.
    out = pl.pallas_call(
        block_kernel,
        out_shape=jax.ShapeDtypeStruct((Bb * Ss, Ee), jnp.float32),
        in_specs=[pl.BlockSpec(memory_space=pltpu.MemorySpace.VMEM)] * 4,
        out_specs=pl.BlockSpec(memory_space=pltpu.MemorySpace.VMEM),
        scratch_shapes=[pltpu.VMEM((Bb * Ss, Ee), jnp.float32)],
    )(x2, w1, w2, bias_pack)
    return out.reshape(Bb, Ss, Ee)


# ------------- pure-JAX reference (for correctness check) -------------
def ref_block(x, params):
    g1, b1, wa, ba, wp, bp, g2, b2, wf, bf, wm, bm = params
    h = _layernorm(x, g1, b1)
    qkv = h @ wa + ba
    q, k, v = jnp.split(qkv, 3, axis=-1)

    def heads(t):
        return t.reshape(B, S, H, DH).transpose(0, 2, 1, 3)

    qh, kh, vh = heads(q), heads(k), heads(v)
    s = jnp.einsum('bhsd,bhtd->bhst', qh, kh)
    if SCALE:
        s = s / math.sqrt(DH)
    mask = jnp.tril(jnp.ones((S, S), bool))
    s = jnp.where(mask, s, MASKED_BIAS)
    w = jax.nn.softmax(s, axis=-1)
    a = jnp.einsum('bhst,bhtd->bhsd', w, vh).transpose(0, 2, 1, 3).reshape(B, S, E)
    a = a @ wp + bp
    x1 = x + a
    h2 = _layernorm(x1, g2, b2)
    hf = _gelu_new(h2 @ wf + bf)
    m = hf @ wm + bm
    return x1 + m


if __name__ == "__main__":
    key = jax.random.PRNGKey(0)
    keys = jax.random.split(key, 16)

    # Deterministic synthetic parameters (GPT-2-style init, biases small nonzero).
    params = [
        jnp.ones((1, E), jnp.float32),                                    # ln_1.weight
        jnp.zeros((1, E), jnp.float32),                                   # ln_1.bias
        0.02 * jax.random.normal(keys[0], (E, 3 * E), jnp.float32),       # c_attn.W
        0.01 * jax.random.normal(keys[1], (1, 3 * E), jnp.float32),       # c_attn.b
        0.02 * jax.random.normal(keys[2], (E, E), jnp.float32),           # c_proj.W
        0.01 * jax.random.normal(keys[3], (1, E), jnp.float32),           # c_proj.b
        jnp.ones((1, E), jnp.float32),                                    # ln_2.weight
        jnp.zeros((1, E), jnp.float32),                                   # ln_2.bias
        0.02 * jax.random.normal(keys[4], (E, FF), jnp.float32),          # mlp.c_fc.W
        0.01 * jax.random.normal(keys[5], (1, FF), jnp.float32),          # mlp.c_fc.b
        0.02 * jax.random.normal(keys[6], (FF, E), jnp.float32),          # mlp.c_proj.W
        0.01 * jax.random.normal(keys[7], (1, E), jnp.float32),           # mlp.c_proj.b
    ]

    x = jax.random.normal(keys[8], (B, S, E), jnp.float32)

    out = gpt2_block(x, params)
    out = jax.block_until_ready(out)

    ref = ref_block(x, params)
    # tolerance accounts for the EUP approx-reciprocal softmax denominator
    np.testing.assert_allclose(np.asarray(out), np.asarray(ref),
                               rtol=1e-3, atol=1e-3)

    # TODO(synk): layer_past / use_cache ("present") / attention_mask / head_mask /
    # use_seq2seq_mask / output_attentions paths not exercised (all default
    # None/False in Block.forward); dropouts are eval-mode identity.
    print("KERNEL_OK")
</pallas_src>

<mosaic_0001>
module attributes {stable_mosaic.version = 11 : i64} {
  func.func @block_kernel(%arg0: memref<16x32xf32, #tpu.memory_space<vmem>>, %arg1: memref<32x256xf32, #tpu.memory_space<vmem>>, %arg2: memref<128x32xf32, #tpu.memory_space<vmem>>, %arg3: memref<8x128xf32, #tpu.memory_space<vmem>>, %arg4: memref<16x32xf32, #tpu.memory_space<vmem>>, %arg5: memref<16x32xf32, #tpu.memory_space<vmem>>) attributes {dimension_semantics = [], scalar_prefetch = 0 : i64, scratch_operands = 1 : i64, tpu.core_type = #tpu.core_type<tc>} {
    %c0 = arith.constant 0 : index
    %c0_0 = arith.constant 0 : index
    %0 = vector.load %arg0[%c0, %c0_0] : memref<16x32xf32, #tpu.memory_space<vmem>>, vector<16x32xf32>
    %c0_1 = arith.constant 0 : index
    %c0_2 = arith.constant 0 : index
    %1 = vector.load %arg3[%c0_1, %c0_2] : memref<8x128xf32, #tpu.memory_space<vmem>>, vector<1x32xf32>
    %c1 = arith.constant 1 : index
    %c0_3 = arith.constant 0 : index
    %2 = vector.load %arg3[%c1, %c0_3] : memref<8x128xf32, #tpu.memory_space<vmem>>, vector<1x32xf32>
    %c2 = arith.constant 2 : index
    %c0_4 = arith.constant 0 : index
    %3 = vector.load %arg3[%c2, %c0_4] : memref<8x128xf32, #tpu.memory_space<vmem>>, vector<1x32xf32>
    %c3 = arith.constant 3 : index
    %c0_5 = arith.constant 0 : index
    %4 = vector.load %arg3[%c3, %c0_5] : memref<8x128xf32, #tpu.memory_space<vmem>>, vector<1x32xf32>
    %c4 = arith.constant 4 : index
    %c0_6 = arith.constant 0 : index
    %5 = vector.load %arg3[%c4, %c0_6] : memref<8x128xf32, #tpu.memory_space<vmem>>, vector<1x96xf32>
    %c5 = arith.constant 5 : index
    %c0_7 = arith.constant 0 : index
    %6 = vector.load %arg3[%c5, %c0_7] : memref<8x128xf32, #tpu.memory_space<vmem>>, vector<1x32xf32>
    %c6 = arith.constant 6 : index
    %c0_8 = arith.constant 0 : index
    %7 = vector.load %arg3[%c6, %c0_8] : memref<8x128xf32, #tpu.memory_space<vmem>>, vector<1x128xf32>
    %c7 = arith.constant 7 : index
    %c0_9 = arith.constant 0 : index
    %8 = vector.load %arg3[%c7, %c0_9] : memref<8x128xf32, #tpu.memory_space<vmem>>, vector<1x32xf32>
    %cst = arith.constant dense<0.000000e+00> : vector<16xf32>
    %9 = vector.multi_reduction <add>, %0, %cst [1] : vector<16x32xf32> to vector<16xf32>
    %10 = vector.shape_cast %9 : vector<16xf32> to vector<16x1xf32>
    %cst_10 = arith.constant 3.200000e+01 : f32
    %11 = vector.broadcast %cst_10 : f32 to vector<16x1xf32>
    %12 = arith.divf %10, %11 : vector<16x1xf32>
    %13 = vector.broadcast %12 : vector<16x1xf32> to vector<16x32xf32>
    %14 = arith.subf %0, %13 : vector<16x32xf32>
    %15 = arith.mulf %14, %14 : vector<16x32xf32>
    %cst_11 = arith.constant dense<0.000000e+00> : vector<16xf32>
    %16 = vector.multi_reduction <add>, %15, %cst_11 [1] : vector<16x32xf32> to vector<16xf32>
    %17 = vector.shape_cast %16 : vector<16xf32> to vector<16x1xf32>
    %cst_12 = arith.constant 3.200000e+01 : f32
    %18 = vector.broadcast %cst_12 : f32 to vector<16x1xf32>
    %19 = arith.divf %17, %18 : vector<16x1xf32>
    %20 = vector.broadcast %12 : vector<16x1xf32> to vector<16x32xf32>
    %21 = arith.subf %0, %20 : vector<16x32xf32>
    %cst_13 = arith.constant 9.99999974E-6 : f32
    %22 = vector.broadcast %cst_13 : f32 to vector<16x1xf32>
    %23 = arith.addf %19, %22 : vector<16x1xf32>
    %24 = math.rsqrt %23 : vector<16x1xf32>
    %25 = vector.broadcast %24 : vector<16x1xf32> to vector<16x32xf32>
    %26 = arith.mulf %21, %25 : vector<16x32xf32>
    %27 = vector.broadcast %1 : vector<1x32xf32> to vector<16x32xf32>
    %28 = arith.mulf %26, %27 : vector<16x32xf32>
    %29 = vector.broadcast %2 : vector<1x32xf32> to vector<16x32xf32>
    %30 = arith.addf %28, %29 : vector<16x32xf32>
    %c0_14 = arith.constant 0 : index
    %c0_15 = arith.constant 0 : index
    %31 = vector.load %arg1[%c0_14, %c0_15] : memref<32x256xf32, #tpu.memory_space<vmem>>, vector<32x96xf32>
    %cst_16 = arith.constant dense<0.000000e+00> : vector<16x96xf32>
    %32 = tpu.matmul %30, %31, %cst_16 {dimension_numbers = #tpu.dot_dimension_numbers<[1], [0], [0], [1], [0, 0, 1, 1], [], []>} : vector<16x32xf32>, vector<32x96xf32>, vector<16x96xf32> -> vector<16x96xf32>
    %33 = vector.broadcast %5 : vector<1x96xf32> to vector<16x96xf32>
    %34 = arith.addf %32, %33 : vector<16x96xf32>
    %35 = vector.extract_strided_slice %34 {offsets = [0, 0], sizes = [16, 32], strides = [1, 1]} : vector<16x96xf32> to vector<16x32xf32>
    %36 = vector.shape_cast %35 : vector<16x32xf32> to vector<2x8x32xf32>
    %37 = vector.extract_strided_slice %36 {offsets = [0, 0, 0], sizes = [2, 8, 8], strides = [1, 1, 1]} : vector<2x8x32xf32> to vector<2x8x8xf32>
    %38 = vector.extract_strided_slice %36 {offsets = [0, 0, 8], sizes = [2, 8, 8], strides = [1, 1, 1]} : vector<2x8x32xf32> to vector<2x8x8xf32>
    %39 = vector.extract_strided_slice %36 {offsets = [0, 0, 16], sizes = [2, 8, 8], strides = [1, 1, 1]} : vector<2x8x32xf32> to vector<2x8x8xf32>
    %40 = vector.extract_strided_slice %36 {offsets = [0, 0, 24], sizes = [2, 8, 8], strides = [1, 1, 1]} : vector<2x8x32xf32> to vector<2x8x8xf32>
    %41 = tpu.concatenate %37, %38, %39, %40 in 0 : vector<2x8x8xf32>, vector<2x8x8xf32>, vector<2x8x8xf32>, vector<2x8x8xf32> -> vector<8x8x8xf32>
    %42 = vector.extract_strided_slice %34 {offsets = [0, 32], sizes = [16, 32], strides = [1, 1]} : vector<16x96xf32> to vector<16x32xf32>
    %43 = vector.shape_cast %42 : vector<16x32xf32> to vector<2x8x32xf32>
    %44 = vector.extract_strided_slice %43 {offsets = [0, 0, 0], sizes = [2, 8, 8], strides = [1, 1, 1]} : vector<2x8x32xf32> to vector<2x8x8xf32>
    %45 = vector.extract_strided_slice %43 {offsets = [0, 0, 8], sizes = [2, 8, 8], strides = [1, 1, 1]} : vector<2x8x32xf32> to vector<2x8x8xf32>
    %46 = vector.extract_strided_slice %43 {offsets = [0, 0, 16], sizes = [2, 8, 8], strides = [1, 1, 1]} : vector<2x8x32xf32> to vector<2x8x8xf32>
    %47 = vector.extract_strided_slice %43 {offsets = [0, 0, 24], sizes = [2, 8, 8], strides = [1, 1, 1]} : vector<2x8x32xf32> to vector<2x8x8xf32>
    %48 = tpu.concatenate %44, %45, %46, %47 in 0 : vector<2x8x8xf32>, vector<2x8x8xf32>, vector<2x8x8xf32>, vector<2x8x8xf32> -> vector<8x8x8xf32>
    %49 = vector.extract_strided_slice %34 {offsets = [0, 64], sizes = [16, 32], strides = [1, 1]} : vector<16x96xf32> to vector<16x32xf32>
    %50 = vector.shape_cast %49 : vector<16x32xf32> to vector<2x8x32xf32>
    %51 = vector.extract_strided_slice %50 {offsets = [0, 0, 0], sizes = [2, 8, 8], strides = [1, 1, 1]} : vector<2x8x32xf32> to vector<2x8x8xf32>
    %52 = vector.extract_strided_slice %50 {offsets = [0, 0, 8], sizes = [2, 8, 8], strides = [1, 1, 1]} : vector<2x8x32xf32> to vector<2x8x8xf32>
    %53 = vector.extract_strided_slice %50 {offsets = [0, 0, 16], sizes = [2, 8, 8], strides = [1, 1, 1]} : vector<2x8x32xf32> to vector<2x8x8xf32>
    %54 = vector.extract_strided_slice %50 {offsets = [0, 0, 24], sizes = [2, 8, 8], strides = [1, 1, 1]} : vector<2x8x32xf32> to vector<2x8x8xf32>
    %55 = tpu.concatenate %51, %52, %53, %54 in 0 : vector<2x8x8xf32>, vector<2x8x8xf32>, vector<2x8x8xf32>, vector<2x8x8xf32> -> vector<8x8x8xf32>
    "tpu.trace_start"() <{level = 10 : i32, message = "nqd,nkd->nqk"}> : () -> ()
    %cst_17 = arith.constant dense<0.000000e+00> : vector<8x8x8xf32>
    %56 = tpu.matmul %41, %48, %cst_17 {dimension_numbers = #tpu.dot_dimension_numbers<[2], [2], [1], [1], [0, 0, 0, 1, 1, 1], [0], [0]>} : vector<8x8x8xf32>, vector<8x8x8xf32>, vector<8x8x8xf32> -> vector<8x8x8xf32>
    "tpu.trace_stop"() : () -> ()
    %57 = tpu.iota {dimensions = array<i32: 1>} : vector<8x8x8xi32>
    %58 = tpu.iota {dimensions = array<i32: 2>} : vector<8x8x8xi32>
    %59 = arith.cmpi sle, %58, %57 : vector<8x8x8xi32>
    %cst_18 = arith.constant -1.000000e+04 : f32
    %60 = vector.broadcast %cst_18 : f32 to vector<8x8x8xf32>
    %61 = arith.select %59, %56, %60 : vector<8x8x8xi1>, vector<8x8x8xf32>
    %cst_19 = arith.constant dense<0xFF800000> : vector<8x8xf32>
    %62 = vector.multi_reduction <maximumf>, %61, %cst_19 [2] : vector<8x8x8xf32> to vector<8x8xf32>
    %63 = vector.shape_cast %62 : vector<8x8xf32> to vector<8x8x1xf32>
    %64 = vector.broadcast %63 : vector<8x8x1xf32> to vector<8x8x8xf32>
    %65 = arith.subf %61, %64 : vector<8x8x8xf32>
    %66 = math.exp %65 : vector<8x8x8xf32>
    %cst_20 = arith.constant dense<0.000000e+00> : vector<8x8xf32>
    %67 = vector.multi_reduction <add>, %66, %cst_20 [2] : vector<8x8x8xf32> to vector<8x8xf32>
    %68 = vector.shape_cast %67 : vector<8x8xf32> to vector<8x8x1xf32>
    %69 = tpu.reciprocal %68 {approx = true} : vector<8x8x1xf32> -> vector<8x8x1xf32>
    %70 = vector.broadcast %69 : vector<8x8x1xf32> to vector<8x8x8xf32>
    %71 = arith.mulf %66, %70 : vector<8x8x8xf32>
    "tpu.trace_start"() <{level = 10 : i32, message = "nqk,nkd->nqd"}> : () -> ()
    %cst_21 = arith.constant dense<0.000000e+00> : vector<8x8x8xf32>
    %72 = tpu.matmul %71, %55, %cst_21 {dimension_numbers = #tpu.dot_dimension_numbers<[2], [1], [1], [2], [0, 0, 0, 1, 1, 2], [0], [0]>} : vector<8x8x8xf32>, vector<8x8x8xf32>, vector<8x8x8xf32> -> vector<8x8x8xf32>
    "tpu.trace_stop"() : () -> ()
    %73 = vector.extract_strided_slice %72 {offsets = [0, 0, 0], sizes = [2, 8, 8], strides = [1, 1, 1]} : vector<8x8x8xf32> to vector<2x8x8xf32>
    %74 = vector.shape_cast %73 : vector<2x8x8xf32> to vector<16x8xf32>
    %c0_22 = arith.constant 0 : index
    %c0_23 = arith.constant 0 : index
    %75 = vector.load %arg5[%c0_22, %c0_23] : memref<16x32xf32, #tpu.memory_space<vmem>>, vector<16x8xf32>
    tpu.vector_store %arg5[%c0_22, %c0_23], %74 {strides = array<i32>} : memref<16x32xf32, #tpu.memory_space<vmem>>, vector<16x8xf32>,
    %76 = vector.extract_strided_slice %72 {offsets = [2, 0, 0], sizes = [2, 8, 8], strides = [1, 1, 1]} : vector<8x8x8xf32> to vector<2x8x8xf32>
    %77 = vector.shape_cast %76 : vector<2x8x8xf32> to vector<16x8xf32>
    %c0_24 = arith.constant 0 : index
    %c8 = arith.constant 8 : index
    %78 = vector.load %arg5[%c0_24, %c8] : memref<16x32xf32, #tpu.memory_space<vmem>>, vector<16x8xf32>
    tpu.vector_store %arg5[%c0_24, %c8], %77 {strides = array<i32>} : memref<16x32xf32, #tpu.memory_space<vmem>>, vector<16x8xf32>,
    %79 = vector.extract_strided_slice %72 {offsets = [4, 0, 0], sizes = [2, 8, 8], strides = [1, 1, 1]} : vector<8x8x8xf32> to vector<2x8x8xf32>
    %80 = vector.shape_cast %79 : vector<2x8x8xf32> to vector<16x8xf32>
    %c0_25 = arith.constant 0 : index
    %c16 = arith.constant 16 : index
    %81 = vector.load %arg5[%c0_25, %c16] : memref<16x32xf32, #tpu.memory_space<vmem>>, vector<16x8xf32>
    tpu.vector_store %arg5[%c0_25, %c16], %80 {strides = array<i32>} : memref<16x32xf32, #tpu.memory_space<vmem>>, vector<16x8xf32>,
    %82 = vector.extract_strided_slice %72 {offsets = [6, 0, 0], sizes = [2, 8, 8], strides = [1, 1, 1]} : vector<8x8x8xf32> to vector<2x8x8xf32>
    %83 = vector.shape_cast %82 : vector<2x8x8xf32> to vector<16x8xf32>
    %c0_26 = arith.constant 0 : index
    %c24 = arith.constant 24 : index
    %84 = vector.load %arg5[%c0_26, %c24] : memref<16x32xf32, #tpu.memory_space<vmem>>, vector<16x8xf32>
    tpu.vector_store %arg5[%c0_26, %c24], %83 {strides = array<i32>} : memref<16x32xf32, #tpu.memory_space<vmem>>, vector<16x8xf32>,
    %c0_27 = arith.constant 0 : index
    %c0_28 = arith.constant 0 : index
    %85 = vector.load %arg5[%c0_27, %c0_28] : memref<16x32xf32, #tpu.memory_space<vmem>>, vector<16x32xf32>
    %c0_29 = arith.constant 0 : index
    %c96 = arith.constant 96 : index
    %86 = vector.load %arg1[%c0_29, %c96] : memref<32x256xf32, #tpu.memory_space<vmem>>, vector<32x32xf32>
    %cst_30 = arith.constant dense<0.000000e+00> : vector<16x32xf32>
    %87 = tpu.matmul %85, %86, %cst_30 {dimension_numbers = #tpu.dot_dimension_numbers<[1], [0], [0], [1], [0, 0, 1, 1], [], []>} : vector<16x32xf32>, vector<32x32xf32>, vector<16x32xf32> -> vector<16x32xf32>
    %88 = vector.broadcast %6 : vector<1x32xf32> to vector<16x32xf32>
    %89 = arith.addf %87, %88 : vector<16x32xf32>
    %90 = arith.addf %0, %89 : vector<16x32xf32>
    %cst_31 = arith.constant dense<0.000000e+00> : vector<16xf32>
    %91 = vector.multi_reduction <add>, %90, %cst_31 [1] : vector<16x32xf32> to vector<16xf32>
    %92 = vector.shape_cast %91 : vector<16xf32> to vector<16x1xf32>
    %cst_32 = arith.constant 3.200000e+01 : f32
    %93 = vector.broadcast %cst_32 : f32 to vector<16x1xf32>
    %94 = arith.divf %92, %93 : vector<16x1xf32>
    %95 = vector.broadcast %94 : vector<16x1xf32> to vector<16x32xf32>
    %96 = arith.subf %90, %95 : vector<16x32xf32>
    %97 = arith.mulf %96, %96 : vector<16x32xf32>
    %cst_33 = arith.constant dense<0.000000e+00> : vector<16xf32>
    %98 = vector.multi_reduction <add>, %97, %cst_33 [1] : vector<16x32xf32> to vector<16xf32>
    %99 = vector.shape_cast %98 : vector<16xf32> to vector<16x1xf32>
    %cst_34 = arith.constant 3.200000e+01 : f32
    %100 = vector.broadcast %cst_34 : f32 to vector<16x1xf32>
    %101 = arith.divf %99, %100 : vector<16x1xf32>
    %102 = vector.broadcast %94 : vector<16x1xf32> to vector<16x32xf32>
    %103 = arith.subf %90, %102 : vector<16x32xf32>
    %cst_35 = arith.constant 9.99999974E-6 : f32
    %104 = vector.broadcast %cst_35 : f32 to vector<16x1xf32>
    %105 = arith.addf %101, %104 : vector<16x1xf32>
    %106 = math.rsqrt %105 : vector<16x1xf32>
    %107 = vector.broadcast %106 : vector<16x1xf32> to vector<16x32xf32>
    %108 = arith.mulf %103, %107 : vector<16x32xf32>
    %109 = vector.broadcast %3 : vector<1x32xf32> to vector<16x32xf32>
    %110 = arith.mulf %108, %109 : vector<16x32xf32>
    %111 = vector.broadcast %4 : vector<1x32xf32> to vector<16x32xf32>
    %112 = arith.addf %110, %111 : vector<16x32xf32>
    %c0_36 = arith.constant 0 : index
    %c128 = arith.constant 128 : index
    %113 = vector.load %arg1[%c0_36, %c128] : memref<32x256xf32, #tpu.memory_space<vmem>>, vector<32x128xf32>
    %cst_37 = arith.constant dense<0.000000e+00> : vector<16x128xf32>
    %114 = tpu.matmul %112, %113, %cst_37 {dimension_numbers = #tpu.dot_dimension_numbers<[1], [0], [0], [1], [0, 0, 1, 1], [], []>} : vector<16x32xf32>, vector<32x128xf32>, vector<16x128xf32> -> vector<16x128xf32>
    %115 = vector.broadcast %7 : vector<1x128xf32> to vector<16x128xf32>
    %116 = arith.addf %114, %115 : vector<16x128xf32>
    %cst_38 = arith.constant 5.000000e-01 : f32
    %117 = vector.broadcast %cst_38 : f32 to vector<16x128xf32>
    %118 = arith.mulf %117, %116 : vector<16x128xf32>
    %cst_39 = arith.constant 4.471500e-02 : f32
    %119 = vector.broadcast %cst_39 : f32 to vector<16x128xf32>
    %120 = arith.mulf %119, %116 : vector<16x128xf32>
    %121 = arith.mulf %120, %116 : vector<16x128xf32>
    %122 = arith.mulf %121, %116 : vector<16x128xf32>
    %123 = arith.addf %116, %122 : vector<16x128xf32>
    %cst_40 = arith.constant 0.797884583 : f32
    %124 = vector.broadcast %cst_40 : f32 to vector<16x128xf32>
    %125 = arith.mulf %124, %123 : vector<16x128xf32>
    %126 = math.tanh %125 : vector<16x128xf32>
    %cst_41 = arith.constant 1.000000e+00 : f32
    %127 = vector.broadcast %cst_41 : f32 to vector<16x128xf32>
    %128 = arith.addf %127, %126 : vector<16x128xf32>
    %129 = arith.mulf %118, %128 : vector<16x128xf32>
    %c0_42 = arith.constant 0 : index
    %c0_43 = arith.constant 0 : index
    %130 = vector.load %arg2[%c0_42, %c0_43] : memref<128x32xf32, #tpu.memory_space<vmem>>, vector<128x32xf32>
    %cst_44 = arith.constant dense<0.000000e+00> : vector<16x32xf32>
    %131 = tpu.matmul %129, %130, %cst_44 {dimension_numbers = #tpu.dot_dimension_numbers<[1], [0], [0], [1], [0, 0, 1, 1], [], []>} : vector<16x128xf32>, vector<128x32xf32>, vector<16x32xf32> -> vector<16x32xf32>
    %132 = vector.broadcast %8 : vector<1x32xf32> to vector<16x32xf32>
    %133 = arith.addf %131, %132 : vector<16x32xf32>
    %134 = arith.addf %90, %133 : vector<16x32xf32>
    %c0_45 = arith.constant 0 : index
    %c0_46 = arith.constant 0 : index
    %135 = vector.load %arg4[%c0_45, %c0_46] : memref<16x32xf32, #tpu.memory_space<vmem>>, vector<16x32xf32>
    tpu.vector_store %arg4[%c0_45, %c0_46], %134 {strides = array<i32>} : memref<16x32xf32, #tpu.memory_space<vmem>>, vector<16x32xf32>,
    return
  }
}

</mosaic_0001>

<llo_original>
// kernel: tpu_custom_call.1
$region0: #{tpu_custom_call.1}
  #allocation0 [shape = 'u32[]', space=smem, size = 0x4, offset = 0x4, fixed_abs, tag = 'smem constant byte address 0x4 - core index']
  #allocation1 [shape = 'u32[144,128]{1,0:T(1,128)}', space=vmem, size = 0x12000, scoped, tag = 'internal scratch']
  #allocation2 [shape = 'f32[16,32]{1,0:T(8,128)}', space=vmem, size = 0x2000, scoped, tag = 'scratch operand']
  %s0 = inlined_call_operand.vmem [shape: f32[16,32], index: 0, kind: input, shape index: {}]
  %s1 = inlined_call_operand.vmem [shape: f32[32,256], index: 1, kind: input, shape index: {}]
  %s2 = inlined_call_operand.vmem [shape: f32[128,32], index: 2, kind: input, shape index: {}]
  %s3 = inlined_call_operand.vmem [shape: f32[8,128], index: 3, kind: input, shape index: {}]
  %s4 = inlined_call_operand.hbm [shape: f32[16,32], index: 4, kind: output, shape index: {}]
  %s5 = sld [smem:[#allocation0]]
  $region26: #{tpu_custom_call.1} parent=0
    _
  %s7 = ssub.s32 1, %s5
  %s8 = scalar_select 0, %s7, %s5
  $region1: #{tpu_custom_call.1} parent=0
    #allocation3 [shape = 'u8[8192]{0}', space=vmem, size = 0x2000, scoped, tag = 'output window, operand 0, single buffered']
    #allocation4 [shape = 's32[1]{0}', space=sflag, size = 0x4, scoped, tag = 'scoped memory for tpu_custom_call.1']
    %9 = vsyncpa [#allocation4], 0
    // Predicated region
    $region2: #{tpu_custom_call.1} parent=1 // pred_check
      _
    $region3: #{tpu_custom_call.1} parent=1 // pred_check_branch
      %11 = sbr.rel (0) target = $region5
    $region4: #{tpu_custom_call.1} parent=1 // pred_region
      _
    $region5: #{tpu_custom_call.1} parent=1 // pred_fallthru
      _
    // Predicated region
    $region6: #{tpu_custom_call.1} parent=1 // pred_check
      _
    $region7: #{tpu_custom_call.1} parent=1 // pred_check_branch
      %13 = sbr.rel (0) target = $region9
    $region8: #{tpu_custom_call.1} parent=1 // pred_region
      _
    $region9: #{tpu_custom_call.1} parent=1 // pred_fallthru
      _
    // Predicated region
    $region10: #{tpu_custom_call.1} parent=1 // pred_check
      _
    $region11: #{tpu_custom_call.1} parent=1 // pred_check_branch
      %15 = sbr.rel (0) target = $region13
    $region12: #{tpu_custom_call.1} parent=1 // pred_region
      _
    $region13: #{tpu_custom_call.1} parent=1 // pred_fallthru
      _
    // Predicated region
    $region14: #{tpu_custom_call.1} parent=1 // pred_check
      _
    $region15: #{tpu_custom_call.1} parent=1 // pred_check_branch
      %17 = sbr.rel (0) target = $region17
    $region16: #{tpu_custom_call.1} parent=1 // pred_region
      _
    $region17: #{tpu_custom_call.1} parent=1 // pred_fallthru
      _
    %v18 = vld [vmem:[%s0] sm:$0xff]
    %v19 = vld [vmem:[%s0 + $0x8] sm:$0xff]
    %v20 = vld [vmem:[%s3] sm:$0x1]
    %v21 = vld [vmem:[%s3 + $0x1] sm:$0x1]
    %v22 = vld [vmem:[%s3 + $0x2] sm:$0x1]
    %v23 = vld [vmem:[%s3 + $0x3] sm:$0x1]
    %v24 = vld [vmem:[%s3 + $0x4] sm:$0x1]
    %v25 = vld [vmem:[%s3 + $0x5] sm:$0x1]
    %v26 = vld [vmem:[%s3 + $0x6] sm:$0x1]
    %v27 = vld [vmem:[%s3 + $0x7] sm:$0x1]
    %vm28 = vcmask 261120
    %v29 = vsel %vm28, %v18, 0.0
    %30 = vadd.xlane.f32.xlu0 %v29
    %v31 = vpop.xlane.xlu0 %30
    %v32 = vsel %vm28, %v19, 0.0
    %33 = vadd.xlane.f32.xlu0 %v32
    %v34 = vpop.xlane.xlu0 %33
    %v35 = vrcp.pop 32.0
    %v36 = vmul.f32 %v31, %v35
    %v37 = vmul.f32 %v34, %v35
    %v38 = vsub.f32 %v18, %v36
    %v39 = vsub.f32 %v19, %v37
    %v40 = vmul.f32 %v38, %v38
    %v41 = vmul.f32 %v39, %v39
    %v42 = vsel %vm28, %v40, 0.0
    %43 = vadd.xlane.f32.xlu0 %v42
    %v44 = vpop.xlane.xlu0 %43
    %v45 = vsel %vm28, %v41, 0.0
    %46 = vadd.xlane.f32.xlu0 %v45
    %v47 = vpop.xlane.xlu0 %46
    %v48 = vmul.f32 %v44, %v35
    %v49 = vmul.f32 %v47, %v35
    %v50 = vadd.f32 %v48, 1e-05
    %v51 = vadd.f32 %v49, 1e-05
    %v52 = vrsqrt.pop %v50
    %v53 = vrsqrt.pop %v51
    %v54 = vmul.f32 %v38, %v52
    %v55 = vmul.f32 %v39, %v53
    %v56 = vlaneseq
    %v57 = vshrl.u32 %v56, 7
    %v58 = vsub.s32 0, %v57
    %v59 = vrot.slane %v20, %v58
    %v60 = vmul.f32 %v54, %v59
    %v61 = vmul.f32 %v55, %v59
    %v62 = vlaneseq
    %v63 = vshrl.u32 %v62, 7
    %v64 = vsub.s32 0, %v63
    %v65 = vrot.slane %v21, %v64
    %v66 = vadd.f32 %v60, %v65
    %v67 = vadd.f32 %v61, %v65
    %v68 = vld [vmem:[%s1] sm:$0xff]
    %v69 = vld [vmem:[%s1 + $0x10] sm:$0xff]
    %v70 = vld [vmem:[%s1 + $0x20] sm:$0xff]
    %v71 = vld [vmem:[%s1 + $0x30] sm:$0xff]
    %v72 = vlaneseq
    %v73 = vshrl.u32 %v72, 7
    %v74 = vsub.s32 0, %v73
    %v75 = vrot.slane %v24, %v74
    %v77 = vsel %vm28, %v66, 0
    %v80 = vsel %vm28, %v67, 0
    %82 = vmatprep.subr.mxu0 0.0
    %83 = vmatpush1.msra.mxu0 %v68
    %84 = vmatprep.subr.mxu0 0.0
    %85 = vmatpush1.msra.mxu0 %v69
    %86 = vmatprep.subr.mxu0 0.0
    %87 = vmatpush1.msra.mxu0 %v70
    %88 = vmatprep.subr.mxu0 0.0
    %89 = vmatpush1.msra.mxu0 %v71
    %90 = vmatprep.subr.mxu0 0.0
    %91 = vmatpush1.msra.mxu0 0.0
    %92 = vmatprep.subr.mxu0 0.0
    %93 = vmatpush1.msra.mxu0 0.0
    %94 = vmatprep.subr.mxu0 0.0
    %95 = vmatpush1.msra.mxu0 0.0
    %96 = vmatprep.subr.mxu0 0.0
    %97 = vmatpush1.msra.mxu0 0.0
    %98 = vmatprep.subr.mxu0 0.0
    %99 = vmatpush1.msra.mxu0 0.0
    %100 = vmatprep.subr.mxu0 0.0
    %101 = vmatpush1.msra.mxu0 0.0
    %102 = vmatprep.subr.mxu0 0.0
    %103 = vmatpush1.msra.mxu0 0.0
    %104 = vmatprep.subr.mxu0 0.0
    %105 = vmatpush1.msra.mxu0 0.0
    %106 = vmatprep.subr.mxu0 0.0
    %107 = vmatpush1.msra.mxu0 0.0
    %108 = vmatprep.subr.mxu0 0.0
    %109 = vmatpush1.msra.mxu0 0.0
    %110 = vmatprep.subr.mxu0 0.0
    %111 = vmatpush1.msra.mxu0 0.0
    %112 = vmatprep.subr.mxu0 0.0
    %113 = vmatpush1.msra.mxu0 0.0
    %114 = vmatprep.subr.mxu0 0.0
    %115 = vmatpush1.msra.mxu0 0.0
    %116 = vmatprep.subr.mxu0 0.0
    %117 = vmatpush1.msra.mxu0 0.0
    %118 = vmatprep.subr.mxu0 0.0
    %119 = vmatpush1.msra.mxu0 0.0
    %120 = vmatprep.subr.mxu0 0.0
    %121 = vmatpush1.msra.mxu0 0.0
    %122 = vmatprep.subr.mxu0 0.0
    %123 = vmatpush1.msra.mxu0 0.0
    %124 = vmatprep.subr.mxu0 0.0
    %125 = vmatpush1.msra.mxu0 0.0
    %126 = vmatprep.subr.mxu0 0.0
    %127 = vmatpush1.msra.mxu0 0.0
    %128 = vmatprep.subr.mxu0 0.0
    %129 = vmatpush1.msra.mxu0 0.0
    %130 = vmatprep.subr.mxu0 0.0
    %131 = vmatpush1.msra.mxu0 0.0
    %132 = vmatprep.subr.mxu0 0.0
    %133 = vmatpush1.msra.mxu0 0.0
    %134 = vmatprep.subr.mxu0 0.0
    %135 = vmatpush1.msra.mxu0 0.0
    %136 = vmatprep.subr.mxu0 0.0
    %137 = vmatpush1.msra.mxu0 0.0
    %138 = vmatprep.subr.mxu0 0.0
    %139 = vmatpush1.msra.mxu0 0.0
    %140 = vmatprep.subr.mxu0 0.0
    %141 = vmatpush1.msra.mxu0 0.0
    %142 = vmatprep.subr.mxu0 0.0
    %143 = vmatpush1.msra.mxu0 0.0
    %144 = vmatprep.subr.mxu0 0.0
    %145 = vmatpush1.msra.mxu0 0.0
    %146 = vmatprep.mubr.f32.mxu0 0.0
    %147 = vmatmul.mubr.f32.gmra.mrb[0].mxu0 %v77
    %v148 = vpop.f32.mrb[0].mxu0
    %v149 = vadd.f32 %v75, %v148
    %v150 = vpop.f32.mrb[0].mxu0
    %151 = vmatprep.mubr.f32.mxu0 0.0
    %152 = vmatmul.mubr.f32.gmra.mrb[0].mxu0 %v80
    %v153 = vpop.f32.mrb[0].mxu0
    %v154 = vadd.f32 %v75, %v153
    %v155 = vpop.f32.mrb[0].mxu0
    %156 = vdwg.mxu0
    %159 = vrot.lane.b32.xlu0 %v149, 120
    %v160 = vpop.permute.xlu0 %159
    %161 = vrot.lane.b32.xlu0 %v154, 120
    %v162 = vpop.permute.xlu0 %161
    %163 = vrot.lane.b32.xlu0 %v149, 112
    %v164 = vpop.permute.xlu0 %163
    %165 = vrot.lane.b32.xlu0 %v154, 112
    %v166 = vpop.permute.xlu0 %165
    %167 = vrot.lane.b32.xlu0 %v149, 104
    %v168 = vpop.permute.xlu0 %167
    %169 = vrot.lane.b32.xlu0 %v154, 104
    %v170 = vpop.permute.xlu0 %169
    %171 = vrot.lane.b32.xlu0 %v149, 96
    %v172 = vpop.permute.xlu0 %171
    %vm173 = vcmask 64512
    %v174 = vsel %vm173, %v149, 0
    %v176 = vsel %vm173, %v172, 0
    %178 = vmatprep.subr.mxu0 0.0
    %179 = vmatpush1.xpose.msra.mxu0 %v176
    %180 = vmatprep.subr.mxu0 0.0
    %181 = vmatpush1.xpose.msra.mxu0 0.0
    %182 = vmatprep.subr.mxu0 0.0
    %183 = vmatpush1.xpose.msra.mxu0 0.0
    %184 = vmatprep.subr.mxu0 0.0
    %185 = vmatpush1.xpose.msra.mxu0 0.0
    %186 = vmatprep.subr.mxu0 0.0
    %187 = vmatpush1.xpose.msra.mxu0 0.0
    %188 = vmatprep.subr.mxu0 0.0
    %189 = vmatpush1.xpose.msra.mxu0 0.0
    %190 = vmatprep.subr.mxu0 0.0
    %191 = vmatpush1.xpose.msra.mxu0 0.0
    %192 = vmatprep.subr.mxu0 0.0
    %193 = vmatpush1.xpose.msra.mxu0 0.0
    %194 = vmatprep.subr.mxu0 0.0
    %195 = vmatpush1.xpose.msra.mxu0 0.0
    %196 = vmatprep.subr.mxu0 0.0
    %197 = vmatpush1.xpose.msra.mxu0 0.0
    %198 = vmatprep.subr.mxu0 0.0
    %199 = vmatpush1.xpose.msra.mxu0 0.0
    %200 = vmatprep.subr.mxu0 0.0
    %201 = vmatpush1.xpose.msra.mxu0 0.0
    %202 = vmatprep.subr.mxu0 0.0
    %203 = vmatpush1.xpose.msra.mxu0 0.0
    %204 = vmatprep.subr.mxu0 0.0
    %205 = vmatpush1.xpose.msra.mxu0 0.0
    %206 = vmatprep.subr.mxu0 0.0
    %207 = vmatpush1.xpose.msra.mxu0 0.0
    %208 = vmatprep.subr.mxu0 0.0
    %209 = vmatpush1.xpose.msra.mxu0 0.0
    %210 = vmatprep.subr.mxu0 0.0
    %211 = vmatpush1.xpose.msra.mxu0 0.0
    %212 = vmatprep.subr.mxu0 0.0
    %213 = vmatpush1.xpose.msra.mxu0 0.0
    %214 = vmatprep.subr.mxu0 0.0
    %215 = vmatpush1.xpose.msra.mxu0 0.0
    %216 = vmatprep.subr.mxu0 0.0
    %217 = vmatpush1.xpose.msra.mxu0 0.0
    %218 = vmatprep.subr.mxu0 0.0
    %219 = vmatpush1.xpose.msra.mxu0 0.0
    %220 = vmatprep.subr.mxu0 0.0
    %221 = vmatpush1.xpose.msra.mxu0 0.0
    %222 = vmatprep.subr.mxu0 0.0
    %223 = vmatpush1.xpose.msra.mxu0 0.0
    %224 = vmatprep.subr.mxu0 0.0
    %225 = vmatpush1.xpose.msra.mxu0 0.0
    %226 = vmatprep.subr.mxu0 0.0
    %227 = vmatpush1.xpose.msra.mxu0 0.0
    %228 = vmatprep.subr.mxu0 0.0
    %229 = vmatpush1.xpose.msra.mxu0 0.0
    %230 = vmatprep.subr.mxu0 0.0
    %231 = vmatpush1.xpose.msra.mxu0 0.0
    %232 = vmatprep.subr.mxu0 0.0
    %233 = vmatpush1.xpose.msra.mxu0 0.0
    %234 = vmatprep.subr.mxu0 0.0
    %235 = vmatpush1.xpose.msra.mxu0 0.0
    %236 = vmatprep.subr.mxu0 0.0
    %237 = vmatpush1.xpose.msra.mxu0 0.0
    %238 = vmatprep.subr.mxu0 0.0
    %239 = vmatpush1.xpose.msra.mxu0 0.0
    %240 = vmatprep.subr.mxu0 0.0
    %241 = vmatpush1.xpose.msra.mxu0 0.0
    %242 = vmatprep.mubr.f32.mxu0 0.0
    %243 = vmatmul.mubr.f32.gmra.mrb[0].mxu0 %v174
    %v244 = vpop.f32.mrb[0].mxu0
    %v245 = vadd.f32 0.0, %v244
    %v246 = vpop.f32.mrb[0].mxu0
    %247 = vdwg.mxu0
    %248 = vrot.lane.b32.xlu0 %v154, 96
    %v249 = vpop.permute.xlu0 %248
    %v250 = vsel %vm173, %v154, 0
    %v252 = vsel %vm173, %v249, 0
    %254 = vmatprep.subr.mxu0 0.0
    %255 = vmatpush1.xpose.msra.mxu0 %v252
    %256 = vmatprep.subr.mxu0 0.0
    %257 = vmatpush1.xpose.msra.mxu0 0.0
    %258 = vmatprep.subr.mxu0 0.0
    %259 = vmatpush1.xpose.msra.mxu0 0.0
    %260 = vmatprep.subr.mxu0 0.0
    %261 = vmatpush1.xpose.msra.mxu0 0.0
    %262 = vmatprep.subr.mxu0 0.0
    %263 = vmatpush1.xpose.msra.mxu0 0.0
    %264 = vmatprep.subr.mxu0 0.0
    %265 = vmatpush1.xpose.msra.mxu0 0.0
    %266 = vmatprep.subr.mxu0 0.0
    %267 = vmatpush1.xpose.msra.mxu0 0.0
    %268 = vmatprep.subr.mxu0 0.0
    %269 = vmatpush1.xpose.msra.mxu0 0.0
    %270 = vmatprep.subr.mxu0 0.0
    %271 = vmatpush1.xpose.msra.mxu0 0.0
    %272 = vmatprep.subr.mxu0 0.0
    %273 = vmatpush1.xpose.msra.mxu0 0.0
    %274 = vmatprep.subr.mxu0 0.0
    %275 = vmatpush1.xpose.msra.mxu0 0.0
    %276 = vmatprep.subr.mxu0 0.0
    %277 = vmatpush1.xpose.msra.mxu0 0.0
    %278 = vmatprep.subr.mxu0 0.0
    %279 = vmatpush1.xpose.msra.mxu0 0.0
    %280 = vmatprep.subr.mxu0 0.0
    %281 = vmatpush1.xpose.msra.mxu0 0.0
    %282 = vmatprep.subr.mxu0 0.0
    %283 = vmatpush1.xpose.msra.mxu0 0.0
    %284 = vmatprep.subr.mxu0 0.0
    %285 = vmatpush1.xpose.msra.mxu0 0.0
    %286 = vmatprep.subr.mxu0 0.0
    %287 = vmatpush1.xpose.msra.mxu0 0.0
    %288 = vmatprep.subr.mxu0 0.0
    %289 = vmatpush1.xpose.msra.mxu0 0.0
    %290 = vmatprep.subr.mxu0 0.0
    %291 = vmatpush1.xpose.msra.mxu0 0.0
    %292 = vmatprep.subr.mxu0 0.0
    %293 = vmatpush1.xpose.msra.mxu0 0.0
    %294 = vmatprep.subr.mxu0 0.0
    %295 = vmatpush1.xpose.msra.mxu0 0.0
    %296 = vmatprep.subr.mxu0 0.0
    %297 = vmatpush1.xpose.msra.mxu0 0.0
    %298 = vmatprep.subr.mxu0 0.0
    %299 = vmatpush1.xpose.msra.mxu0 0.0
    %300 = vmatprep.subr.mxu0 0.0
    %301 = vmatpush1.xpose.msra.mxu0 0.0
    %302 = vmatprep.subr.mxu0 0.0
    %303 = vmatpush1.xpose.msra.mxu0 0.0
    %304 = vmatprep.subr.mxu0 0.0
    %305 = vmatpush1.xpose.msra.mxu0 0.0
    %306 = vmatprep.subr.mxu0 0.0
    %307 = vmatpush1.xpose.msra.mxu0 0.0
    %308 = vmatprep.subr.mxu0 0.0
    %309 = vmatpush1.xpose.msra.mxu0 0.0
    %310 = vmatprep.subr.mxu0 0.0
    %311 = vmatpush1.xpose.msra.mxu0 0.0
    %312 = vmatprep.subr.mxu0 0.0
    %313 = vmatpush1.xpose.msra.mxu0 0.0
    %314 = vmatprep.subr.mxu0 0.0
    %315 = vmatpush1.xpose.msra.mxu0 0.0
    %316 = vmatprep.subr.mxu0 0.0
    %317 = vmatpush1.xpose.msra.mxu0 0.0
    %318 = vmatprep.mubr.f32.mxu0 0.0
    %319 = vmatmul.mubr.f32.gmra.mrb[0].mxu0 %v250
    %v320 = vpop.f32.mrb[0].mxu0
    %v321 = vadd.f32 0.0, %v320
    %v322 = vpop.f32.mrb[0].mxu0
    %323 = vdwg.mxu0
    %324 = vrot.lane.b32.xlu0 %v160, 96
    %v325 = vpop.permute.xlu0 %324
    %v326 = vsel %vm173, %v160, 0
    %v328 = vsel %vm173, %v325, 0
    %330 = vmatprep.subr.mxu0 0.0
    %331 = vmatpush1.xpose.msra.mxu0 %v328
    %332 = vmatprep.subr.mxu0 0.0
    %333 = vmatpush1.xpose.msra.mxu0 0.0
    %334 = vmatprep.subr.mxu0 0.0
    %335 = vmatpush1.xpose.msra.mxu0 0.0
    %336 = vmatprep.subr.mxu0 0.0
    %337 = vmatpush1.xpose.msra.mxu0 0.0
    %338 = vmatprep.subr.mxu0 0.0
    %339 = vmatpush1.xpose.msra.mxu0 0.0
    %340 = vmatprep.subr.mxu0 0.0
    %341 = vmatpush1.xpose.msra.mxu0 0.0
    %342 = vmatprep.subr.mxu0 0.0
    %343 = vmatpush1.xpose.msra.mxu0 0.0
    %344 = vmatprep.subr.mxu0 0.0
    %345 = vmatpush1.xpose.msra.mxu0 0.0
    %346 = vmatprep.subr.mxu0 0.0
    %347 = vmatpush1.xpose.msra.mxu0 0.0
    %348 = vmatprep.subr.mxu0 0.0
    %349 = vmatpush1.xpose.msra.mxu0 0.0
    %350 = vmatprep.subr.mxu0 0.0
    %351 = vmatpush1.xpose.msra.mxu0 0.0
    %352 = vmatprep.subr.mxu0 0.0
    %353 = vmatpush1.xpose.msra.mxu0 0.0
    %354 = vmatprep.subr.mxu0 0.0
    %355 = vmatpush1.xpose.msra.mxu0 0.0
    %356 = vmatprep.subr.mxu0 0.0
    %357 = vmatpush1.xpose.msra.mxu0 0.0
    %358 = vmatprep.subr.mxu0 0.0
    %359 = vmatpush1.xpose.msra.mxu0 0.0
    %360 = vmatprep.subr.mxu0 0.0
    %361 = vmatpush1.xpose.msra.mxu0 0.0
    %362 = vmatprep.subr.mxu0 0.0
    %363 = vmatpush1.xpose.msra.mxu0 0.0
    %364 = vmatprep.subr.mxu0 0.0
    %365 = vmatpush1.xpose.msra.mxu0 0.0
    %366 = vmatprep.subr.mxu0 0.0
    %367 = vmatpush1.xpose.msra.mxu0 0.0
    %368 = vmatprep.subr.mxu0 0.0
    %369 = vmatpush1.xpose.msra.mxu0 0.0
    %370 = vmatprep.subr.mxu0 0.0
    %371 = vmatpush1.xpose.msra.mxu0 0.0
    %372 = vmatprep.subr.mxu0 0.0
    %373 = vmatpush1.xpose.msra.mxu0 0.0
    %374 = vmatprep.subr.mxu0 0.0
    %375 = vmatpush1.xpose.msra.mxu0 0.0
    %376 = vmatprep.subr.mxu0 0.0
    %377 = vmatpush1.xpose.msra.mxu0 0.0
    %378 = vmatprep.subr.mxu0 0.0
    %379 = vmatpush1.xpose.msra.mxu0 0.0
    %380 = vmatprep.subr.mxu0 0.0
    %381 = vmatpush1.xpose.msra.mxu0 0.0
    %382 = vmatprep.subr.mxu0 0.0
    %383 = vmatpush1.xpose.msra.mxu0 0.0
    %384 = vmatprep.subr.mxu0 0.0
    %385 = vmatpush1.xpose.msra.mxu0 0.0
    %386 = vmatprep.subr.mxu0 0.0
    %387 = vmatpush1.xpose.msra.mxu0 0.0
    %388 = vmatprep.subr.mxu0 0.0
    %389 = vmatpush1.xpose.msra.mxu0 0.0
    %390 = vmatprep.subr.mxu0 0.0
    %391 = vmatpush1.xpose.msra.mxu0 0.0
    %392 = vmatprep.subr.mxu0 0.0
    %393 = vmatpush1.xpose.msra.mxu0 0.0
    %394 = vmatprep.mubr.f32.mxu0 0.0
    %395 = vmatmul.mubr.f32.gmra.mrb[0].mxu0 %v326
    %v396 = vpop.f32.mrb[0].mxu0
    %v397 = vadd.f32 0.0, %v396
    %v398 = vpop.f32.mrb[0].mxu0
    %399 = vdwg.mxu0
    %400 = vrot.lane.b32.xlu0 %v162, 96
    %v401 = vpop.permute.xlu0 %400
    %v402 = vsel %vm173, %v162, 0
    %v404 = vsel %vm173, %v401, 0
    %406 = vmatprep.subr.mxu0 0.0
    %407 = vmatpush1.xpose.msra.mxu0 %v404
    %408 = vmatprep.subr.mxu0 0.0
    %409 = vmatpush1.xpose.msra.mxu0 0.0
    %410 = vmatprep.subr.mxu0 0.0
    %411 = vmatpush1.xpose.msra.mxu0 0.0
    %412 = vmatprep.subr.mxu0 0.0
    %413 = vmatpush1.xpose.msra.mxu0 0.0
    %414 = vmatprep.subr.mxu0 0.0
    %415 = vmatpush1.xpose.msra.mxu0 0.0
    %416 = vmatprep.subr.mxu0 0.0
    %417 = vmatpush1.xpose.msra.mxu0 0.0
    %418 = vmatprep.subr.mxu0 0.0
    %419 = vmatpush1.xpose.msra.mxu0 0.0
    %420 = vmatprep.subr.mxu0 0.0
    %421 = vmatpush1.xpose.msra.mxu0 0.0
    %422 = vmatprep.subr.mxu0 0.0
    %423 = vmatpush1.xpose.msra.mxu0 0.0
    %424 = vmatprep.subr.mxu0 0.0
    %425 = vmatpush1.xpose.msra.mxu0 0.0
    %426 = vmatprep.subr.mxu0 0.0
    %427 = vmatpush1.xpose.msra.mxu0 0.0
    %428 = vmatprep.subr.mxu0 0.0
    %429 = vmatpush1.xpose.msra.mxu0 0.0
    %430 = vmatprep.subr.mxu0 0.0
    %431 = vmatpush1.xpose.msra.mxu0 0.0
    %432 = vmatprep.subr.mxu0 0.0
    %433 = vmatpush1.xpose.msra.mxu0 0.0
    %434 = vmatprep.subr.mxu0 0.0
    %435 = vmatpush1.xpose.msra.mxu0 0.0
    %436 = vmatprep.subr.mxu0 0.0
    %437 = vmatpush1.xpose.msra.mxu0 0.0
    %438 = vmatprep.subr.mxu0 0.0
    %439 = vmatpush1.xpose.msra.mxu0 0.0
    %440 = vmatprep.subr.mxu0 0.0
    %441 = vmatpush1.xpose.msra.mxu0 0.0
    %442 = vmatprep.subr.mxu0 0.0
    %443 = vmatpush1.xpose.msra.mxu0 0.0
    %444 = vmatprep.subr.mxu0 0.0
    %445 = vmatpush1.xpose.msra.mxu0 0.0
    %446 = vmatprep.subr.mxu0 0.0
    %447 = vmatpush1.xpose.msra.mxu0 0.0
    %448 = vmatprep.subr.mxu0 0.0
    %449 = vmatpush1.xpose.msra.mxu0 0.0
    %450 = vmatprep.subr.mxu0 0.0
    %451 = vmatpush1.xpose.msra.mxu0 0.0
    %452 = vmatprep.subr.mxu0 0.0
    %453 = vmatpush1.xpose.msra.mxu0 0.0
    %454 = vmatprep.subr.mxu0 0.0
    %455 = vmatpush1.xpose.msra.mxu0 0.0
    %456 = vmatprep.subr.mxu0 0.0
    %457 = vmatpush1.xpose.msra.mxu0 0.0
    %458 = vmatprep.subr.mxu0 0.0
    %459 = vmatpush1.xpose.msra.mxu0 0.0
    %460 = vmatprep.subr.mxu0 0.0
    %461 = vmatpush1.xpose.msra.mxu0 0.0
    %462 = vmatprep.subr.mxu0 0.0
    %463 = vmatpush1.xpose.msra.mxu0 0.0
    %464 = vmatprep.subr.mxu0 0.0
    %465 = vmatpush1.xpose.msra.mxu0 0.0
    %466 = vmatprep.subr.mxu0 0.0
    %467 = vmatpush1.xpose.msra.mxu0 0.0
    %468 = vmatprep.subr.mxu0 0.0
    %469 = vmatpush1.xpose.msra.mxu0 0.0
    %470 = vmatprep.mubr.f32.mxu0 0.0
    %471 = vmatmul.mubr.f32.gmra.mrb[0].mxu0 %v402
    %v472 = vpop.f32.mrb[0].mxu0
    %v473 = vadd.f32 0.0, %v472
    %v474 = vpop.f32.mrb[0].mxu0
    %475 = vdwg.mxu0
    %476 = vrot.lane.b32.xlu0 %v164, 96
    %v477 = vpop.permute.xlu0 %476
    %v478 = vsel %vm173, %v164, 0
    %v480 = vsel %vm173, %v477, 0
    %482 = vmatprep.subr.mxu0 0.0
    %483 = vmatpush1.xpose.msra.mxu0 %v480
    %484 = vmatprep.subr.mxu0 0.0
    %485 = vmatpush1.xpose.msra.mxu0 0.0
    %486 = vmatprep.subr.mxu0 0.0
    %487 = vmatpush1.xpose.msra.mxu0 0.0
    %488 = vmatprep.subr.mxu0 0.0
    %489 = vmatpush1.xpose.msra.mxu0 0.0
    %490 = vmatprep.subr.mxu0 0.0
    %491 = vmatpush1.xpose.msra.mxu0 0.0
    %492 = vmatprep.subr.mxu0 0.0
    %493 = vmatpush1.xpose.msra.mxu0 0.0
    %494 = vmatprep.subr.mxu0 0.0
    %495 = vmatpush1.xpose.msra.mxu0 0.0
    %496 = vmatprep.subr.mxu0 0.0
    %497 = vmatpush1.xpose.msra.mxu0 0.0
    %498 = vmatprep.subr.mxu0 0.0
    %499 = vmatpush1.xpose.msra.mxu0 0.0
    %500 = vmatprep.subr.mxu0 0.0
    %501 = vmatpush1.xpose.msra.mxu0 0.0
    %502 = vmatprep.subr.mxu0 0.0
    %503 = vmatpush1.xpose.msra.mxu0 0.0
    %504 = vmatprep.subr.mxu0 0.0
    %505 = vmatpush1.xpose.msra.mxu0 0.0
    %506 = vmatprep.subr.mxu0 0.0
    %507 = vmatpush1.xpose.msra.mxu0 0.0
    %508 = vmatprep.subr.mxu0 0.0
    %509 = vmatpush1.xpose.msra.mxu0 0.0
    %510 = vmatprep.subr.mxu0 0.0
    %511 = vmatpush1.xpose.msra.mxu0 0.0
    %512 = vmatprep.subr.mxu0 0.0
    %513 = vmatpush1.xpose.msra.mxu0 0.0
    %514 = vmatprep.subr.mxu0 0.0
    %515 = vmatpush1.xpose.msra.mxu0 0.0
    %516 = vmatprep.subr.mxu0 0.0
    %517 = vmatpush1.xpose.msra.mxu0 0.0
    %518 = vmatprep.subr.mxu0 0.0
    %519 = vmatpush1.xpose.msra.mxu0 0.0
    %520 = vmatprep.subr.mxu0 0.0
    %521 = vmatpush1.xpose.msra.mxu0 0.0
    %522 = vmatprep.subr.mxu0 0.0
    %523 = vmatpush1.xpose.msra.mxu0 0.0
    %524 = vmatprep.subr.mxu0 0.0
    %525 = vmatpush1.xpose.msra.mxu0 0.0
    %526 = vmatprep.subr.mxu0 0.0
    %527 = vmatpush1.xpose.msra.mxu0 0.0
    %528 = vmatprep.subr.mxu0 0.0
    %529 = vmatpush1.xpose.msra.mxu0 0.0
    %530 = vmatprep.subr.mxu0 0.0
    %531 = vmatpush1.xpose.msra.mxu0 0.0
    %532 = vmatprep.subr.mxu0 0.0
    %533 = vmatpush1.xpose.msra.mxu0 0.0
    %534 = vmatprep.subr.mxu0 0.0
    %535 = vmatpush1.xpose.msra.mxu0 0.0
    %536 = vmatprep.subr.mxu0 0.0
    %537 = vmatpush1.xpose.msra.mxu0 0.0
    %538 = vmatprep.subr.mxu0 0.0
    %539 = vmatpush1.xpose.msra.mxu0 0.0
    %540 = vmatprep.subr.mxu0 0.0
    %541 = vmatpush1.xpose.msra.mxu0 0.0
    %542 = vmatprep.subr.mxu0 0.0
    %543 = vmatpush1.xpose.msra.mxu0 0.0
    %544 = vmatprep.subr.mxu0 0.0
    %545 = vmatpush1.xpose.msra.mxu0 0.0
    %546 = vmatprep.mubr.f32.mxu0 0.0
    %547 = vmatmul.mubr.f32.gmra.mrb[0].mxu0 %v478
    %v548 = vpop.f32.mrb[0].mxu0
    %v549 = vadd.f32 0.0, %v548
    %v550 = vpop.f32.mrb[0].mxu0
    %551 = vdwg.mxu0
    %552 = vrot.lane.b32.xlu0 %v166, 96
    %v553 = vpop.permute.xlu0 %552
    %v554 = vsel %vm173, %v166, 0
    %v556 = vsel %vm173, %v553, 0
    %558 = vmatprep.subr.mxu0 0.0
    %559 = vmatpush1.xpose.msra.mxu0 %v556
    %560 = vmatprep.subr.mxu0 0.0
    %561 = vmatpush1.xpose.msra.mxu0 0.0
    %562 = vmatprep.subr.mxu0 0.0
    %563 = vmatpush1.xpose.msra.mxu0 0.0
    %564 = vmatprep.subr.mxu0 0.0
    %565 = vmatpush1.xpose.msra.mxu0 0.0
    %566 = vmatprep.subr.mxu0 0.0
    %567 = vmatpush1.xpose.msra.mxu0 0.0
    %568 = vmatprep.subr.mxu0 0.0
    %569 = vmatpush1.xpose.msra.mxu0 0.0
    %570 = vmatprep.subr.mxu0 0.0
    %571 = vmatpush1.xpose.msra.mxu0 0.0
    %572 = vmatprep.subr.mxu0 0.0
    %573 = vmatpush1.xpose.msra.mxu0 0.0
    %574 = vmatprep.subr.mxu0 0.0
    %575 = vmatpush1.xpose.msra.mxu0 0.0
    %576 = vmatprep.subr.mxu0 0.0
    %577 = vmatpush1.xpose.msra.mxu0 0.0
    %578 = vmatprep.subr.mxu0 0.0
    %579 = vmatpush1.xpose.msra.mxu0 0.0
    %580 = vmatprep.subr.mxu0 0.0
    %581 = vmatpush1.xpose.msra.mxu0 0.0
    %582 = vmatprep.subr.mxu0 0.0
    %583 = vmatpush1.xpose.msra.mxu0 0.0
    %584 = vmatprep.subr.mxu0 0.0
    %585 = vmatpush1.xpose.msra.mxu0 0.0
    %586 = vmatprep.subr.mxu0 0.0
    %587 = vmatpush1.xpose.msra.mxu0 0.0
    %588 = vmatprep.subr.mxu0 0.0
    %589 = vmatpush1.xpose.msra.mxu0 0.0
    %590 = vmatprep.subr.mxu0 0.0
    %591 = vmatpush1.xpose.msra.mxu0 0.0
    %592 = vmatprep.subr.mxu0 0.0
    %593 = vmatpush1.xpose.msra.mxu0 0.0
    %594 = vmatprep.subr.mxu0 0.0
    %595 = vmatpush1.xpose.msra.mxu0 0.0
    %596 = vmatprep.subr.mxu0 0.0
    %597 = vmatpush1.xpose.msra.mxu0 0.0
    %598 = vmatprep.subr.mxu0 0.0
    %599 = vmatpush1.xpose.msra.mxu0 0.0
    %600 = vmatprep.subr.mxu0 0.0
    %601 = vmatpush1.xpose.msra.mxu0 0.0
    %602 = vmatprep.subr.mxu0 0.0
    %603 = vmatpush1.xpose.msra.mxu0 0.0
    %604 = vmatprep.subr.mxu0 0.0
    %605 = vmatpush1.xpose.msra.mxu0 0.0
    %606 = vmatprep.subr.mxu0 0.0
    %607 = vmatpush1.xpose.msra.mxu0 0.0
    %608 = vmatprep.subr.mxu0 0.0
    %609 = vmatpush1.xpose.msra.mxu0 0.0
    %610 = vmatprep.subr.mxu0 0.0
    %611 = vmatpush1.xpose.msra.mxu0 0.0
    %612 = vmatprep.subr.mxu0 0.0
    %613 = vmatpush1.xpose.msra.mxu0 0.0
    %614 = vmatprep.subr.mxu0 0.0
    %615 = vmatpush1.xpose.msra.mxu0 0.0
    %616 = vmatprep.subr.mxu0 0.0
    %617 = vmatpush1.xpose.msra.mxu0 0.0
    %618 = vmatprep.subr.mxu0 0.0
    %619 = vmatpush1.xpose.msra.mxu0 0.0
    %620 = vmatprep.subr.mxu0 0.0
    %621 = vmatpush1.xpose.msra.mxu0 0.0
    %622 = vmatprep.mubr.f32.mxu0 0.0
    %623 = vmatmul.mubr.f32.gmra.mrb[0].mxu0 %v554
    %v624 = vpop.f32.mrb[0].mxu0
    %v625 = vadd.f32 0.0, %v624
    %v626 = vpop.f32.mrb[0].mxu0
    %627 = vdwg.mxu0
    %628 = vrot.lane.b32.xlu0 %v168, 96
    %v629 = vpop.permute.xlu0 %628
    %v630 = vsel %vm173, %v168, 0
    %v632 = vsel %vm173, %v629, 0
    %634 = vmatprep.subr.mxu0 0.0
    %635 = vmatpush1.xpose.msra.mxu0 %v632
    %636 = vmatprep.subr.mxu0 0.0
    %637 = vmatpush1.xpose.msra.mxu0 0.0
    %638 = vmatprep.subr.mxu0 0.0
    %639 = vmatpush1.xpose.msra.mxu0 0.0
    %640 = vmatprep.subr.mxu0 0.0
    %641 = vmatpush1.xpose.msra.mxu0 0.0
    %642 = vmatprep.subr.mxu0 0.0
    %643 = vmatpush1.xpose.msra.mxu0 0.0
    %644 = vmatprep.subr.mxu0 0.0
    %645 = vmatpush1.xpose.msra.mxu0 0.0
    %646 = vmatprep.subr.mxu0 0.0
    %647 = vmatpush1.xpose.msra.mxu0 0.0
    %648 = vmatprep.subr.mxu0 0.0
    %649 = vmatpush1.xpose.msra.mxu0 0.0
    %650 = vmatprep.subr.mxu0 0.0
    %651 = vmatpush1.xpose.msra.mxu0 0.0
    %652 = vmatprep.subr.mxu0 0.0
    %653 = vmatpush1.xpose.msra.mxu0 0.0
    %654 = vmatprep.subr.mxu0 0.0
    %655 = vmatpush1.xpose.msra.mxu0 0.0
    %656 = vmatprep.subr.mxu0 0.0
    %657 = vmatpush1.xpose.msra.mxu0 0.0
    %658 = vmatprep.subr.mxu0 0.0
    %659 = vmatpush1.xpose.msra.mxu0 0.0
    %660 = vmatprep.subr.mxu0 0.0
    %661 = vmatpush1.xpose.msra.mxu0 0.0
    %662 = vmatprep.subr.mxu0 0.0
    %663 = vmatpush1.xpose.msra.mxu0 0.0
    %664 = vmatprep.subr.mxu0 0.0
    %665 = vmatpush1.xpose.msra.mxu0 0.0
    %666 = vmatprep.subr.mxu0 0.0
    %667 = vmatpush1.xpose.msra.mxu0 0.0
    %668 = vmatprep.subr.mxu0 0.0
    %669 = vmatpush1.xpose.msra.mxu0 0.0
    %670 = vmatprep.subr.mxu0 0.0
    %671 = vmatpush1.xpose.msra.mxu0 0.0
    %672 = vmatprep.subr.mxu0 0.0
    %673 = vmatpush1.xpose.msra.mxu0 0.0
    %674 = vmatprep.subr.mxu0 0.0
    %675 = vmatpush1.xpose.msra.mxu0 0.0
    %676 = vmatprep.subr.mxu0 0.0
    %677 = vmatpush1.xpose.msra.mxu0 0.0
    %678 = vmatprep.subr.mxu0 0.0
    %679 = vmatpush1.xpose.msra.mxu0 0.0
    %680 = vmatprep.subr.mxu0 0.0
    %681 = vmatpush1.xpose.msra.mxu0 0.0
    %682 = vmatprep.subr.mxu0 0.0
    %683 = vmatpush1.xpose.msra.mxu0 0.0
    %684 = vmatprep.subr.mxu0 0.0
    %685 = vmatpush1.xpose.msra.mxu0 0.0
    %686 = vmatprep.subr.mxu0 0.0
    %687 = vmatpush1.xpose.msra.mxu0 0.0
    %688 = vmatprep.subr.mxu0 0.0
    %689 = vmatpush1.xpose.msra.mxu0 0.0
    %690 = vmatprep.subr.mxu0 0.0
    %691 = vmatpush1.xpose.msra.mxu0 0.0
    %692 = vmatprep.subr.mxu0 0.0
    %693 = vmatpush1.xpose.msra.mxu0 0.0
    %694 = vmatprep.subr.mxu0 0.0
    %695 = vmatpush1.xpose.msra.mxu0 0.0
    %696 = vmatprep.subr.mxu0 0.0
    %697 = vmatpush1.xpose.msra.mxu0 0.0
    %698 = vmatprep.mubr.f32.mxu0 0.0
    %699 = vmatmul.mubr.f32.gmra.mrb[0].mxu0 %v630
    %v700 = vpop.f32.mrb[0].mxu0
    %v701 = vadd.f32 0.0, %v700
    %v702 = vpop.f32.mrb[0].mxu0
    %703 = vdwg.mxu0
    %704 = vrot.lane.b32.xlu0 %v170, 96
    %v705 = vpop.permute.xlu0 %704
    %v706 = vsel %vm173, %v170, 0
    %v708 = vsel %vm173, %v705, 0
    %710 = vmatprep.subr.mxu0 0.0
    %711 = vmatpush1.xpose.msra.mxu0 %v708
    %712 = vmatprep.subr.mxu0 0.0
    %713 = vmatpush1.xpose.msra.mxu0 0.0
    %714 = vmatprep.subr.mxu0 0.0
    %715 = vmatpush1.xpose.msra.mxu0 0.0
    %716 = vmatprep.subr.mxu0 0.0
    %717 = vmatpush1.xpose.msra.mxu0 0.0
    %718 = vmatprep.subr.mxu0 0.0
    %719 = vmatpush1.xpose.msra.mxu0 0.0
    %720 = vmatprep.subr.mxu0 0.0
    %721 = vmatpush1.xpose.msra.mxu0 0.0
    %722 = vmatprep.subr.mxu0 0.0
    %723 = vmatpush1.xpose.msra.mxu0 0.0
    %724 = vmatprep.subr.mxu0 0.0
    %725 = vmatpush1.xpose.msra.mxu0 0.0
    %726 = vmatprep.subr.mxu0 0.0
    %727 = vmatpush1.xpose.msra.mxu0 0.0
    %728 = vmatprep.subr.mxu0 0.0
    %729 = vmatpush1.xpose.msra.mxu0 0.0
    %730 = vmatprep.subr.mxu0 0.0
    %731 = vmatpush1.xpose.msra.mxu0 0.0
    %732 = vmatprep.subr.mxu0 0.0
    %733 = vmatpush1.xpose.msra.mxu0 0.0
    %734 = vmatprep.subr.mxu0 0.0
    %735 = vmatpush1.xpose.msra.mxu0 0.0
    %736 = vmatprep.subr.mxu0 0.0
    %737 = vmatpush1.xpose.msra.mxu0 0.0
    %738 = vmatprep.subr.mxu0 0.0
    %739 = vmatpush1.xpose.msra.mxu0 0.0
    %740 = vmatprep.subr.mxu0 0.0
    %741 = vmatpush1.xpose.msra.mxu0 0.0
    %742 = vmatprep.subr.mxu0 0.0
    %743 = vmatpush1.xpose.msra.mxu0 0.0
    %744 = vmatprep.subr.mxu0 0.0
    %745 = vmatpush1.xpose.msra.mxu0 0.0
    %746 = vmatprep.subr.mxu0 0.0
    %747 = vmatpush1.xpose.msra.mxu0 0.0
    %748 = vmatprep.subr.mxu0 0.0
    %749 = vmatpush1.xpose.msra.mxu0 0.0
    %750 = vmatprep.subr.mxu0 0.0
    %751 = vmatpush1.xpose.msra.mxu0 0.0
    %752 = vmatprep.subr.mxu0 0.0
    %753 = vmatpush1.xpose.msra.mxu0 0.0
    %754 = vmatprep.subr.mxu0 0.0
    %755 = vmatpush1.xpose.msra.mxu0 0.0
    %756 = vmatprep.subr.mxu0 0.0
    %757 = vmatpush1.xpose.msra.mxu0 0.0
    %758 = vmatprep.subr.mxu0 0.0
    %759 = vmatpush1.xpose.msra.mxu0 0.0
    %760 = vmatprep.subr.mxu0 0.0
    %761 = vmatpush1.xpose.msra.mxu0 0.0
    %762 = vmatprep.subr.mxu0 0.0
    %763 = vmatpush1.xpose.msra.mxu0 0.0
    %764 = vmatprep.subr.mxu0 0.0
    %765 = vmatpush1.xpose.msra.mxu0 0.0
    %766 = vmatprep.subr.mxu0 0.0
    %767 = vmatpush1.xpose.msra.mxu0 0.0
    %768 = vmatprep.subr.mxu0 0.0
    %769 = vmatpush1.xpose.msra.mxu0 0.0
    %770 = vmatprep.subr.mxu0 0.0
    %771 = vmatpush1.xpose.msra.mxu0 0.0
    %772 = vmatprep.subr.mxu0 0.0
    %773 = vmatpush1.xpose.msra.mxu0 0.0
    %774 = vmatprep.mubr.f32.mxu0 0.0
    %775 = vmatmul.mubr.f32.gmra.mrb[0].mxu0 %v706
    %v776 = vpop.f32.mrb[0].mxu0
    %v777 = vadd.f32 0.0, %v776
    %v778 = vpop.f32.mrb[0].mxu0
    %779 = vdwg.mxu0
    %v780 = vlaneseq
    %v781 = vshrl.u32 %v780, 7
    %v782 = vlaneseq
    %v783 = vand.u32 %v782, 127
    %vm784 = vcmp.le.s32.totalorder %v783, %v781
    %v785 = vsel %vm784, %v245, -10000.0
    %v786 = vsel %vm784, %v321, -10000.0
    %v787 = vsel %vm784, %v397, -10000.0
    %v788 = vsel %vm784, %v473, -10000.0
    %v789 = vsel %vm784, %v549, -10000.0
    %v790 = vsel %vm784, %v625, -10000.0
    %v791 = vsel %vm784, %v701, -10000.0
    %v792 = vsel %vm784, %v777, -10000.0
    %v793 = vsel %vm173, %v785, -inf
    %794 = vmax.xlane.f32.xlu0 %v793
    %v795 = vpop.xlane.xlu0 %794
    %v796 = vsel %vm173, %v786, -inf
    %797 = vmax.xlane.f32.xlu0 %v796
    %v798 = vpop.xlane.xlu0 %797
    %v799 = vsel %vm173, %v787, -inf
    %800 = vmax.xlane.f32.xlu0 %v799
    %v801 = vpop.xlane.xlu0 %800
    %v802 = vsel %vm173, %v788, -inf
    %803 = vmax.xlane.f32.xlu0 %v802
    %v804 = vpop.xlane.xlu0 %803
    %v805 = vsel %vm173, %v789, -inf
    %806 = vmax.xlane.f32.xlu0 %v805
    %v807 = vpop.xlane.xlu0 %806
    %v808 = vsel %vm173, %v790, -inf
    %809 = vmax.xlane.f32.xlu0 %v808
    %v810 = vpop.xlane.xlu0 %809
    %v811 = vsel %vm173, %v791, -inf
    %812 = vmax.xlane.f32.xlu0 %v811
    %v813 = vpop.xlane.xlu0 %812
    %v814 = vsel %vm173, %v792, -inf
    %815 = vmax.xlane.f32.xlu0 %v814
    %v816 = vpop.xlane.xlu0 %815
    %v817 = vsub.f32 %v785, %v795
    %v818 = vsub.f32 %v786, %v798
    %v819 = vsub.f32 %v787, %v801
    %v820 = vsub.f32 %v788, %v804
    %v821 = vsub.f32 %v789, %v807
    %v822 = vsub.f32 %v790, %v810
    %v823 = vsub.f32 %v791, %v813
    %v824 = vsub.f32 %v792, %v816
    %v825 = vmul.f32 %v817, 1.442695
    %v826 = vpow.pop %v825
    %v827 = vmul.f32 %v818, 1.442695
    %v828 = vpow.pop %v827
    %v829 = vmul.f32 %v819, 1.442695
    %v830 = vpow.pop %v829
    %v831 = vmul.f32 %v820, 1.442695
    %v832 = vpow.pop %v831
    %v833 = vmul.f32 %v821, 1.442695
    %v834 = vpow.pop %v833
    %v835 = vmul.f32 %v822, 1.442695
    %v836 = vpow.pop %v835
    %v837 = vmul.f32 %v823, 1.442695
    %v838 = vpow.pop %v837
    %v839 = vmul.f32 %v824, 1.442695
    %v840 = vpow.pop %v839
    %v841 = vsel %vm173, %v826, 0.0
    %842 = vadd.xlane.f32.xlu0 %v841
    %v843 = vpop.xlane.xlu0 %842
    %v844 = vsel %vm173, %v828, 0.0
    %845 = vadd.xlane.f32.xlu0 %v844
    %v846 = vpop.xlane.xlu0 %845
    %v847 = vsel %vm173, %v830, 0.0
    %848 = vadd.xlane.f32.xlu0 %v847
    %v849 = vpop.xlane.xlu0 %848
    %v850 = vsel %vm173, %v832, 0.0
    %851 = vadd.xlane.f32.xlu0 %v850
    %v852 = vpop.xlane.xlu0 %851
    %v853 = vsel %vm173, %v834, 0.0
    %854 = vadd.xlane.f32.xlu0 %v853
    %v855 = vpop.xlane.xlu0 %854
    %v856 = vsel %vm173, %v836, 0.0
    %857 = vadd.xlane.f32.xlu0 %v856
    %v858 = vpop.xlane.xlu0 %857
    %v859 = vsel %vm173, %v838, 0.0
    %860 = vadd.xlane.f32.xlu0 %v859
    %v861 = vpop.xlane.xlu0 %860
    %v862 = vsel %vm173, %v840, 0.0
    %863 = vadd.xlane.f32.xlu0 %v862
    %v864 = vpop.xlane.xlu0 %863
    %v865 = vrcp.pop %v843
    %v866 = vrcp.pop %v846
    %v867 = vrcp.pop %v849
    %v868 = vrcp.pop %v852
    %v869 = vrcp.pop %v855
    %v870 = vrcp.pop %v858
    %v871 = vrcp.pop %v861
    %v872 = vrcp.pop %v864
    %v873 = vmul.f32 %v826, %v865
    %v874 = vmul.f32 %v828, %v866
    %v875 = vmul.f32 %v830, %v867
    %v876 = vmul.f32 %v832, %v868
    %v877 = vmul.f32 %v834, %v869
    %v878 = vmul.f32 %v836, %v870
    %v879 = vmul.f32 %v838, %v871
    %v880 = vmul.f32 %v840, %v872
    %881 = vrot.lane.b32.xlu0 %v149, 64
    %v882 = vpop.permute.xlu0 %881
    %v885 = vsel %vm173, %v873, 0
    %887 = vmatprep.subr.mxu0 0.0
    %888 = vmatpush1.msra.mxu0 %v882
    %889 = vmatprep.subr.mxu0 0.0
    %890 = vmatpush1.msra.mxu0 0.0
    %891 = vmatprep.subr.mxu0 0.0
    %892 = vmatpush1.msra.mxu0 0.0
    %893 = vmatprep.subr.mxu0 0.0
    %894 = vmatpush1.msra.mxu0 0.0
    %895 = vmatprep.subr.mxu0 0.0
    %896 = vmatpush1.msra.mxu0 0.0
    %897 = vmatprep.subr.mxu0 0.0
    %898 = vmatpush1.msra.mxu0 0.0
    %899 = vmatprep.subr.mxu0 0.0
    %900 = vmatpush1.msra.mxu0 0.0
    %901 = vmatprep.subr.mxu0 0.0
    %902 = vmatpush1.msra.mxu0 0.0
    %903 = vmatprep.subr.mxu0 0.0
    %904 = vmatpush1.msra.mxu0 0.0
    %905 = vmatprep.subr.mxu0 0.0
    %906 = vmatpush1.msra.mxu0 0.0
    %907 = vmatprep.subr.mxu0 0.0
    %908 = vmatpush1.msra.mxu0 0.0
    %909 = vmatprep.subr.mxu0 0.0
    %910 = vmatpush1.msra.mxu0 0.0
    %911 = vmatprep.subr.mxu0 0.0
    %912 = vmatpush1.msra.mxu0 0.0
    %913 = vmatprep.subr.mxu0 0.0
    %914 = vmatpush1.msra.mxu0 0.0
    %915 = vmatprep.subr.mxu0 0.0
    %916 = vmatpush1.msra.mxu0 0.0
    %917 = vmatprep.subr.mxu0 0.0
    %918 = vmatpush1.msra.mxu0 0.0
    %919 = vmatprep.subr.mxu0 0.0
    %920 = vmatpush1.msra.mxu0 0.0
    %921 = vmatprep.subr.mxu0 0.0
    %922 = vmatpush1.msra.mxu0 0.0
    %923 = vmatprep.subr.mxu0 0.0
    %924 = vmatpush1.msra.mxu0 0.0
    %925 = vmatprep.subr.mxu0 0.0
    %926 = vmatpush1.msra.mxu0 0.0
    %927 = vmatprep.subr.mxu0 0.0
    %928 = vmatpush1.msra.mxu0 0.0
    %929 = vmatprep.subr.mxu0 0.0
    %930 = vmatpush1.msra.mxu0 0.0
    %931 = vmatprep.subr.mxu0 0.0
    %932 = vmatpush1.msra.mxu0 0.0
    %933 = vmatprep.subr.mxu0 0.0
    %934 = vmatpush1.msra.mxu0 0.0
    %935 = vmatprep.subr.mxu0 0.0
    %936 = vmatpush1.msra.mxu0 0.0
    %937 = vmatprep.subr.mxu0 0.0
    %938 = vmatpush1.msra.mxu0 0.0
    %939 = vmatprep.subr.mxu0 0.0
    %940 = vmatpush1.msra.mxu0 0.0
    %941 = vmatprep.subr.mxu0 0.0
    %942 = vmatpush1.msra.mxu0 0.0
    %943 = vmatprep.subr.mxu0 0.0
    %944 = vmatpush1.msra.mxu0 0.0
    %945 = vmatprep.subr.mxu0 0.0
    %946 = vmatpush1.msra.mxu0 0.0
    %947 = vmatprep.subr.mxu0 0.0
    %948 = vmatpush1.msra.mxu0 0.0
    %949 = vmatprep.subr.mxu0 0.0
    %950 = vmatpush1.msra.mxu0 0.0
    %951 = vmatprep.mubr.f32.mxu0 0.0
    %952 = vmatmul.mubr.f32.gmra.mrb[0].mxu0 %v885
    %v953 = vpop.f32.mrb[0].mxu0
    %v954 = vadd.f32 0.0, %v953
    %v955 = vpop.f32.mrb[0].mxu0
    %956 = vdwg.mxu0
    %957 = vrot.lane.b32.xlu0 %v154, 64
    %v958 = vpop.permute.xlu0 %957
    %v961 = vsel %vm173, %v874, 0
    %963 = vmatprep.subr.mxu0 0.0
    %964 = vmatpush1.msra.mxu0 %v958
    %965 = vmatprep.subr.mxu0 0.0
    %966 = vmatpush1.msra.mxu0 0.0
    %967 = vmatprep.subr.mxu0 0.0
    %968 = vmatpush1.msra.mxu0 0.0
    %969 = vmatprep.subr.mxu0 0.0
    %970 = vmatpush1.msra.mxu0 0.0
    %971 = vmatprep.subr.mxu0 0.0
    %972 = vmatpush1.msra.mxu0 0.0
    %973 = vmatprep.subr.mxu0 0.0
    %974 = vmatpush1.msra.mxu0 0.0
    %975 = vmatprep.subr.mxu0 0.0
    %976 = vmatpush1.msra.mxu0 0.0
    %977 = vmatprep.subr.mxu0 0.0
    %978 = vmatpush1.msra.mxu0 0.0
    %979 = vmatprep.subr.mxu0 0.0
    %980 = vmatpush1.msra.mxu0 0.0
    %981 = vmatprep.subr.mxu0 0.0
    %982 = vmatpush1.msra.mxu0 0.0
    %983 = vmatprep.subr.mxu0 0.0
    %984 = vmatpush1.msra.mxu0 0.0
    %985 = vmatprep.subr.mxu0 0.0
    %986 = vmatpush1.msra.mxu0 0.0
    %987 = vmatprep.subr.mxu0 0.0
    %988 = vmatpush1.msra.mxu0 0.0
    %989 = vmatprep.subr.mxu0 0.0
    %990 = vmatpush1.msra.mxu0 0.0
    %991 = vmatprep.subr.mxu0 0.0
    %992 = vmatpush1.msra.mxu0 0.0
    %993 = vmatprep.subr.mxu0 0.0
    %994 = vmatpush1.msra.mxu0 0.0
    %995 = vmatprep.subr.mxu0 0.0
    %996 = vmatpush1.msra.mxu0 0.0
    %997 = vmatprep.subr.mxu0 0.0
    %998 = vmatpush1.msra.mxu0 0.0
    %999 = vmatprep.subr.mxu0 0.0
    %1000 = vmatpush1.msra.mxu0 0.0
    %1001 = vmatprep.subr.mxu0 0.0
    %1002 = vmatpush1.msra.mxu0 0.0
    %1003 = vmatprep.subr.mxu0 0.0
    %1004 = vmatpush1.msra.mxu0 0.0
    %1005 = vmatprep.subr.mxu0 0.0
    %1006 = vmatpush1.msra.mxu0 0.0
    %1007 = vmatprep.subr.mxu0 0.0
    %1008 = vmatpush1.msra.mxu0 0.0
    %1009 = vmatprep.subr.mxu0 0.0
    %1010 = vmatpush1.msra.mxu0 0.0
    %1011 = vmatprep.subr.mxu0 0.0
    %1012 = vmatpush1.msra.mxu0 0.0
    %1013 = vmatprep.subr.mxu0 0.0
    %1014 = vmatpush1.msra.mxu0 0.0
    %1015 = vmatprep.subr.mxu0 0.0
    %1016 = vmatpush1.msra.mxu0 0.0
    %1017 = vmatprep.subr.mxu0 0.0
    %1018 = vmatpush1.msra.mxu0 0.0
    %1019 = vmatprep.subr.mxu0 0.0
    %1020 = vmatpush1.msra.mxu0 0.0
    %1021 = vmatprep.subr.mxu0 0.0
    %1022 = vmatpush1.msra.mxu0 0.0
    %1023 = vmatprep.subr.mxu0 0.0
    %1024 = vmatpush1.msra.mxu0 0.0
    %1025 = vmatprep.subr.mxu0 0.0
    %1026 = vmatpush1.msra.mxu0 0.0
    %1027 = vmatprep.mubr.f32.mxu0 0.0
    %1028 = vmatmul.mubr.f32.gmra.mrb[0].mxu0 %v961
    %v1029 = vpop.f32.mrb[0].mxu0
    %v1030 = vadd.f32 0.0, %v1029
    %v1031 = vpop.f32.mrb[0].mxu0
    %1032 = vdwg.mxu0
    %1033 = vrot.lane.b32.xlu0 %v160, 64
    %v1034 = vpop.permute.xlu0 %1033
    %v1037 = vsel %vm173, %v875, 0
    %1039 = vmatprep.subr.mxu0 0.0
    %1040 = vmatpush1.msra.mxu0 %v1034
    %1041 = vmatprep.subr.mxu0 0.0
    %1042 = vmatpush1.msra.mxu0 0.0
    %1043 = vmatprep.subr.mxu0 0.0
    %1044 = vmatpush1.msra.mxu0 0.0
    %1045 = vmatprep.subr.mxu0 0.0
    %1046 = vmatpush1.msra.mxu0 0.0
    %1047 = vmatprep.subr.mxu0 0.0
    %1048 = vmatpush1.msra.mxu0 0.0
    %1049 = vmatprep.subr.mxu0 0.0
    %1050 = vmatpush1.msra.mxu0 0.0
    %1051 = vmatprep.subr.mxu0 0.0
    %1052 = vmatpush1.msra.mxu0 0.0
    %1053 = vmatprep.subr.mxu0 0.0
    %1054 = vmatpush1.msra.mxu0 0.0
    %1055 = vmatprep.subr.mxu0 0.0
    %1056 = vmatpush1.msra.mxu0 0.0
    %1057 = vmatprep.subr.mxu0 0.0
    %1058 = vmatpush1.msra.mxu0 0.0
    %1059 = vmatprep.subr.mxu0 0.0
    %1060 = vmatpush1.msra.mxu0 0.0
    %1061 = vmatprep.subr.mxu0 0.0
    %1062 = vmatpush1.msra.mxu0 0.0
    %1063 = vmatprep.subr.mxu0 0.0
    %1064 = vmatpush1.msra.mxu0 0.0
    %1065 = vmatprep.subr.mxu0 0.0
    %1066 = vmatpush1.msra.mxu0 0.0
    %1067 = vmatprep.subr.mxu0 0.0
    %1068 = vmatpush1.msra.mxu0 0.0
    %1069 = vmatprep.subr.mxu0 0.0
    %1070 = vmatpush1.msra.mxu0 0.0
    %1071 = vmatprep.subr.mxu0 0.0
    %1072 = vmatpush1.msra.mxu0 0.0
    %1073 = vmatprep.subr.mxu0 0.0
    %1074 = vmatpush1.msra.mxu0 0.0
    %1075 = vmatprep.subr.mxu0 0.0
    %1076 = vmatpush1.msra.mxu0 0.0
    %1077 = vmatprep.subr.mxu0 0.0
    %1078 = vmatpush1.msra.mxu0 0.0
    %1079 = vmatprep.subr.mxu0 0.0
    %1080 = vmatpush1.msra.mxu0 0.0
    %1081 = vmatprep.subr.mxu0 0.0
    %1082 = vmatpush1.msra.mxu0 0.0
    %1083 = vmatprep.subr.mxu0 0.0
    %1084 = vmatpush1.msra.mxu0 0.0
    %1085 = vmatprep.subr.mxu0 0.0
    %1086 = vmatpush1.msra.mxu0 0.0
    %1087 = vmatprep.subr.mxu0 0.0
    %1088 = vmatpush1.msra.mxu0 0.0
    %1089 = vmatprep.subr.mxu0 0.0
    %1090 = vmatpush1.msra.mxu0 0.0
    %1091 = vmatprep.subr.mxu0 0.0
    %1092 = vmatpush1.msra.mxu0 0.0
    %1093 = vmatprep.subr.mxu0 0.0
    %1094 = vmatpush1.msra.mxu0 0.0
    %1095 = vmatprep.subr.mxu0 0.0
    %1096 = vmatpush1.msra.mxu0 0.0
    %1097 = vmatprep.subr.mxu0 0.0
    %1098 = vmatpush1.msra.mxu0 0.0
    %1099 = vmatprep.subr.mxu0 0.0
    %1100 = vmatpush1.msra.mxu0 0.0
    %1101 = vmatprep.subr.mxu0 0.0
    %1102 = vmatpush1.msra.mxu0 0.0
    %1103 = vmatprep.mubr.f32.mxu0 0.0
    %1104 = vmatmul.mubr.f32.gmra.mrb[0].mxu0 %v1037
    %v1105 = vpop.f32.mrb[0].mxu0
    %v1106 = vadd.f32 0.0, %v1105
    %v1107 = vpop.f32.mrb[0].mxu0
    %1108 = vdwg.mxu0
    %1109 = vrot.lane.b32.xlu0 %v162, 64
    %v1110 = vpop.permute.xlu0 %1109
    %v1113 = vsel %vm173, %v876, 0
    %1115 = vmatprep.subr.mxu0 0.0
    %1116 = vmatpush1.msra.mxu0 %v1110
    %1117 = vmatprep.subr.mxu0 0.0
    %1118 = vmatpush1.msra.mxu0 0.0
    %1119 = vmatprep.subr.mxu0 0.0
    %1120 = vmatpush1.msra.mxu0 0.0
    %1121 = vmatprep.subr.mxu0 0.0
    %1122 = vmatpush1.msra.mxu0 0.0
    %1123 = vmatprep.subr.mxu0 0.0
    %1124 = vmatpush1.msra.mxu0 0.0
    %1125 = vmatprep.subr.mxu0 0.0
    %1126 = vmatpush1.msra.mxu0 0.0
    %1127 = vmatprep.subr.mxu0 0.0
    %1128 = vmatpush1.msra.mxu0 0.0
    %1129 = vmatprep.subr.mxu0 0.0
    %1130 = vmatpush1.msra.mxu0 0.0
    %1131 = vmatprep.subr.mxu0 0.0
    %1132 = vmatpush1.msra.mxu0 0.0
    %1133 = vmatprep.subr.mxu0 0.0
    %1134 = vmatpush1.msra.mxu0 0.0
    %1135 = vmatprep.subr.mxu0 0.0
    %1136 = vmatpush1.msra.mxu0 0.0
    %1137 = vmatprep.subr.mxu0 0.0
    %1138 = vmatpush1.msra.mxu0 0.0
    %1139 = vmatprep.subr.mxu0 0.0
    %1140 = vmatpush1.msra.mxu0 0.0
    %1141 = vmatprep.subr.mxu0 0.0
    %1142 = vmatpush1.msra.mxu0 0.0
    %1143 = vmatprep.subr.mxu0 0.0
    %1144 = vmatpush1.msra.mxu0 0.0
    %1145 = vmatprep.subr.mxu0 0.0
    %1146 = vmatpush1.msra.mxu0 0.0
    %1147 = vmatprep.subr.mxu0 0.0
    %1148 = vmatpush1.msra.mxu0 0.0
    %1149 = vmatprep.subr.mxu0 0.0
    %1150 = vmatpush1.msra.mxu0 0.0
    %1151 = vmatprep.subr.mxu0 0.0
    %1152 = vmatpush1.msra.mxu0 0.0
    %1153 = vmatprep.subr.mxu0 0.0
    %1154 = vmatpush1.msra.mxu0 0.0
    %1155 = vmatprep.subr.mxu0 0.0
    %1156 = vmatpush1.msra.mxu0 0.0
    %1157 = vmatprep.subr.mxu0 0.0
    %1158 = vmatpush1.msra.mxu0 0.0
    %1159 = vmatprep.subr.mxu0 0.0
    %1160 = vmatpush1.msra.mxu0 0.0
    %1161 = vmatprep.subr.mxu0 0.0
    %1162 = vmatpush1.msra.mxu0 0.0
    %1163 = vmatprep.subr.mxu0 0.0
    %1164 = vmatpush1.msra.mxu0 0.0
    %1165 = vmatprep.subr.mxu0 0.0
    %1166 = vmatpush1.msra.mxu0 0.0
    %1167 = vmatprep.subr.mxu0 0.0
    %1168 = vmatpush1.msra.mxu0 0.0
    %1169 = vmatprep.subr.mxu0 0.0
    %1170 = vmatpush1.msra.mxu0 0.0
    %1171 = vmatprep.subr.mxu0 0.0
    %1172 = vmatpush1.msra.mxu0 0.0
    %1173 = vmatprep.subr.mxu0 0.0
    %1174 = vmatpush1.msra.mxu0 0.0
    %1175 = vmatprep.subr.mxu0 0.0
    %1176 = vmatpush1.msra.mxu0 0.0
    %1177 = vmatprep.subr.mxu0 0.0
    %1178 = vmatpush1.msra.mxu0 0.0
    %1179 = vmatprep.mubr.f32.mxu0 0.0
    %1180 = vmatmul.mubr.f32.gmra.mrb[0].mxu0 %v1113
    %v1181 = vpop.f32.mrb[0].mxu0
    %v1182 = vadd.f32 0.0, %v1181
    %v1183 = vpop.f32.mrb[0].mxu0
    %1184 = vdwg.mxu0
    %1185 = vrot.lane.b32.xlu0 %v164, 64
    %v1186 = vpop.permute.xlu0 %1185
    %v1189 = vsel %vm173, %v877, 0
    %1191 = vmatprep.subr.mxu0 0.0
    %1192 = vmatpush1.msra.mxu0 %v1186
    %1193 = vmatprep.subr.mxu0 0.0
    %1194 = vmatpush1.msra.mxu0 0.0
    %1195 = vmatprep.subr.mxu0 0.0
    %1196 = vmatpush1.msra.mxu0 0.0
    %1197 = vmatprep.subr.mxu0 0.0
    %1198 = vmatpush1.msra.mxu0 0.0
    %1199 = vmatprep.subr.mxu0 0.0
    %1200 = vmatpush1.msra.mxu0 0.0
    %1201 = vmatprep.subr.mxu0 0.0
    %1202 = vmatpush1.msra.mxu0 0.0
    %1203 = vmatprep.subr.mxu0 0.0
    %1204 = vmatpush1.msra.mxu0 0.0
    %1205 = vmatprep.subr.mxu0 0.0
    %1206 = vmatpush1.msra.mxu0 0.0
    %1207 = vmatprep.subr.mxu0 0.0
    %1208 = vmatpush1.msra.mxu0 0.0
    %1209 = vmatprep.subr.mxu0 0.0
    %1210 = vmatpush1.msra.mxu0 0.0
    %1211 = vmatprep.subr.mxu0 0.0
    %1212 = vmatpush1.msra.mxu0 0.0
    %1213 = vmatprep.subr.mxu0 0.0
    %1214 = vmatpush1.msra.mxu0 0.0
    %1215 = vmatprep.subr.mxu0 0.0
    %1216 = vmatpush1.msra.mxu0 0.0
    %1217 = vmatprep.subr.mxu0 0.0
    %1218 = vmatpush1.msra.mxu0 0.0
    %1219 = vmatprep.subr.mxu0 0.0
    %1220 = vmatpush1.msra.mxu0 0.0
    %1221 = vmatprep.subr.mxu0 0.0
    %1222 = vmatpush1.msra.mxu0 0.0
    %1223 = vmatprep.subr.mxu0 0.0
    %1224 = vmatpush1.msra.mxu0 0.0
    %1225 = vmatprep.subr.mxu0 0.0
    %1226 = vmatpush1.msra.mxu0 0.0
    %1227 = vmatprep.subr.mxu0 0.0
    %1228 = vmatpush1.msra.mxu0 0.0
    %1229 = vmatprep.subr.mxu0 0.0
    %1230 = vmatpush1.msra.mxu0 0.0
    %1231 = vmatprep.subr.mxu0 0.0
    %1232 = vmatpush1.msra.mxu0 0.0
    %1233 = vmatprep.subr.mxu0 0.0
    %1234 = vmatpush1.msra.mxu0 0.0
    %1235 = vmatprep.subr.mxu0 0.0
    %1236 = vmatpush1.msra.mxu0 0.0
    %1237 = vmatprep.subr.mxu0 0.0
    %1238 = vmatpush1.msra.mxu0 0.0
    %1239 = vmatprep.subr.mxu0 0.0
    %1240 = vmatpush1.msra.mxu0 0.0
    %1241 = vmatprep.subr.mxu0 0.0
    %1242 = vmatpush1.msra.mxu0 0.0
    %1243 = vmatprep.subr.mxu0 0.0
    %1244 = vmatpush1.msra.mxu0 0.0
    %1245 = vmatprep.subr.mxu0 0.0
    %1246 = vmatpush1.msra.mxu0 0.0
    %1247 = vmatprep.subr.mxu0 0.0
    %1248 = vmatpush1.msra.mxu0 0.0
    %1249 = vmatprep.subr.mxu0 0.0
    %1250 = vmatpush1.msra.mxu0 0.0
    %1251 = vmatprep.subr.mxu0 0.0
    %1252 = vmatpush1.msra.mxu0 0.0
    %1253 = vmatprep.subr.mxu0 0.0
    %1254 = vmatpush1.msra.mxu0 0.0
    %1255 = vmatprep.mubr.f32.mxu0 0.0
    %1256 = vmatmul.mubr.f32.gmra.mrb[0].mxu0 %v1189
    %v1257 = vpop.f32.mrb[0].mxu0
    %v1258 = vadd.f32 0.0, %v1257
    %v1259 = vpop.f32.mrb[0].mxu0
    %1260 = vdwg.mxu0
    %1261 = vrot.lane.b32.xlu0 %v166, 64
    %v1262 = vpop.permute.xlu0 %1261
    %v1265 = vsel %vm173, %v878, 0
    %1267 = vmatprep.subr.mxu0 0.0
    %1268 = vmatpush1.msra.mxu0 %v1262
    %1269 = vmatprep.subr.mxu0 0.0
    %1270 = vmatpush1.msra.mxu0 0.0
    %1271 = vmatprep.subr.mxu0 0.0
    %1272 = vmatpush1.msra.mxu0 0.0
    %1273 = vmatprep.subr.mxu0 0.0
    %1274 = vmatpush1.msra.mxu0 0.0
    %1275 = vmatprep.subr.mxu0 0.0
    %1276 = vmatpush1.msra.mxu0 0.0
    %1277 = vmatprep.subr.mxu0 0.0
    %1278 = vmatpush1.msra.mxu0 0.0
    %1279 = vmatprep.subr.mxu0 0.0
    %1280 = vmatpush1.msra.mxu0 0.0
    %1281 = vmatprep.subr.mxu0 0.0
    %1282 = vmatpush1.msra.mxu0 0.0
    %1283 = vmatprep.subr.mxu0 0.0
    %1284 = vmatpush1.msra.mxu0 0.0
    %1285 = vmatprep.subr.mxu0 0.0
    %1286 = vmatpush1.msra.mxu0 0.0
    %1287 = vmatprep.subr.mxu0 0.0
    %1288 = vmatpush1.msra.mxu0 0.0
    %1289 = vmatprep.subr.mxu0 0.0
    %1290 = vmatpush1.msra.mxu0 0.0
    %1291 = vmatprep.subr.mxu0 0.0
    %1292 = vmatpush1.msra.mxu0 0.0
    %1293 = vmatprep.subr.mxu0 0.0
    %1294 = vmatpush1.msra.mxu0 0.0
    %1295 = vmatprep.subr.mxu0 0.0
    %1296 = vmatpush1.msra.mxu0 0.0
    %1297 = vmatprep.subr.mxu0 0.0
    %1298 = vmatpush1.msra.mxu0 0.0
    %1299 = vmatprep.subr.mxu0 0.0
    %1300 = vmatpush1.msra.mxu0 0.0
    %1301 = vmatprep.subr.mxu0 0.0
    %1302 = vmatpush1.msra.mxu0 0.0
    %1303 = vmatprep.subr.mxu0 0.0
    %1304 = vmatpush1.msra.mxu0 0.0
    %1305 = vmatprep.subr.mxu0 0.0
    %1306 = vmatpush1.msra.mxu0 0.0
    %1307 = vmatprep.subr.mxu0 0.0
    %1308 = vmatpush1.msra.mxu0 0.0
    %1309 = vmatprep.subr.mxu0 0.0
    %1310 = vmatpush1.msra.mxu0 0.0
    %1311 = vmatprep.subr.mxu0 0.0
    %1312 = vmatpush1.msra.mxu0 0.0
    %1313 = vmatprep.subr.mxu0 0.0
    %1314 = vmatpush1.msra.mxu0 0.0
    %1315 = vmatprep.subr.mxu0 0.0
    %1316 = vmatpush1.msra.mxu0 0.0
    %1317 = vmatprep.subr.mxu0 0.0
    %1318 = vmatpush1.msra.mxu0 0.0
    %1319 = vmatprep.subr.mxu0 0.0
    %1320 = vmatpush1.msra.mxu0 0.0
    %1321 = vmatprep.subr.mxu0 0.0
    %1322 = vmatpush1.msra.mxu0 0.0
    %1323 = vmatprep.subr.mxu0 0.0
    %1324 = vmatpush1.msra.mxu0 0.0
    %1325 = vmatprep.subr.mxu0 0.0
    %1326 = vmatpush1.msra.mxu0 0.0
    %1327 = vmatprep.subr.mxu0 0.0
    %1328 = vmatpush1.msra.mxu0 0.0
    %1329 = vmatprep.subr.mxu0 0.0
    %1330 = vmatpush1.msra.mxu0 0.0
    %1331 = vmatprep.mubr.f32.mxu0 0.0
    %1332 = vmatmul.mubr.f32.gmra.mrb[0].mxu0 %v1265
    %v1333 = vpop.f32.mrb[0].mxu0
    %v1334 = vadd.f32 0.0, %v1333
    %v1335 = vpop.f32.mrb[0].mxu0
    %1336 = vdwg.mxu0
    %1337 = vrot.lane.b32.xlu0 %v168, 64
    %v1338 = vpop.permute.xlu0 %1337
    %v1341 = vsel %vm173, %v879, 0
    %1343 = vmatprep.subr.mxu0 0.0
    %1344 = vmatpush1.msra.mxu0 %v1338
    %1345 = vmatprep.subr.mxu0 0.0
    %1346 = vmatpush1.msra.mxu0 0.0
    %1347 = vmatprep.subr.mxu0 0.0
    %1348 = vmatpush1.msra.mxu0 0.0
    %1349 = vmatprep.subr.mxu0 0.0
    %1350 = vmatpush1.msra.mxu0 0.0
    %1351 = vmatprep.subr.mxu0 0.0
    %1352 = vmatpush1.msra.mxu0 0.0
    %1353 = vmatprep.subr.mxu0 0.0
    %1354 = vmatpush1.msra.mxu0 0.0
    %1355 = vmatprep.subr.mxu0 0.0
    %1356 = vmatpush1.msra.mxu0 0.0
    %1357 = vmatprep.subr.mxu0 0.0
    %1358 = vmatpush1.msra.mxu0 0.0
    %1359 = vmatprep.subr.mxu0 0.0
    %1360 = vmatpush1.msra.mxu0 0.0
    %1361 = vmatprep.subr.mxu0 0.0
    %1362 = vmatpush1.msra.mxu0 0.0
    %1363 = vmatprep.subr.mxu0 0.0
    %1364 = vmatpush1.msra.mxu0 0.0
    %1365 = vmatprep.subr.mxu0 0.0
    %1366 = vmatpush1.msra.mxu0 0.0
    %1367 = vmatprep.subr.mxu0 0.0
    %1368 = vmatpush1.msra.mxu0 0.0
    %1369 = vmatprep.subr.mxu0 0.0
    %1370 = vmatpush1.msra.mxu0 0.0
    %1371 = vmatprep.subr.mxu0 0.0
    %1372 = vmatpush1.msra.mxu0 0.0
    %1373 = vmatprep.subr.mxu0 0.0
    %1374 = vmatpush1.msra.mxu0 0.0
    %1375 = vmatprep.subr.mxu0 0.0
    %1376 = vmatpush1.msra.mxu0 0.0
    %1377 = vmatprep.subr.mxu0 0.0
    %1378 = vmatpush1.msra.mxu0 0.0
    %1379 = vmatprep.subr.mxu0 0.0
    %1380 = vmatpush1.msra.mxu0 0.0
    %1381 = vmatprep.subr.mxu0 0.0
    %1382 = vmatpush1.msra.mxu0 0.0
    %1383 = vmatprep.subr.mxu0 0.0
    %1384 = vmatpush1.msra.mxu0 0.0
    %1385 = vmatprep.subr.mxu0 0.0
    %1386 = vmatpush1.msra.mxu0 0.0
    %1387 = vmatprep.subr.mxu0 0.0
    %1388 = vmatpush1.msra.mxu0 0.0
    %1389 = vmatprep.subr.mxu0 0.0
    %1390 = vmatpush1.msra.mxu0 0.0
    %1391 = vmatprep.subr.mxu0 0.0
    %1392 = vmatpush1.msra.mxu0 0.0
    %1393 = vmatprep.subr.mxu0 0.0
    %1394 = vmatpush1.msra.mxu0 0.0
    %1395 = vmatprep.subr.mxu0 0.0
    %1396 = vmatpush1.msra.mxu0 0.0
    %1397 = vmatprep.subr.mxu0 0.0
    %1398 = vmatpush1.msra.mxu0 0.0
    %1399 = vmatprep.subr.mxu0 0.0
    %1400 = vmatpush1.msra.mxu0 0.0
    %1401 = vmatprep.subr.mxu0 0.0
    %1402 = vmatpush1.msra.mxu0 0.0
    %1403 = vmatprep.subr.mxu0 0.0
    %1404 = vmatpush1.msra.mxu0 0.0
    %1405 = vmatprep.subr.mxu0 0.0
    %1406 = vmatpush1.msra.mxu0 0.0
    %1407 = vmatprep.mubr.f32.mxu0 0.0
    %1408 = vmatmul.mubr.f32.gmra.mrb[0].mxu0 %v1341
    %v1409 = vpop.f32.mrb[0].mxu0
    %v1410 = vadd.f32 0.0, %v1409
    %v1411 = vpop.f32.mrb[0].mxu0
    %1412 = vdwg.mxu0
    %1413 = vrot.lane.b32.xlu0 %v170, 64
    %v1414 = vpop.permute.xlu0 %1413
    %v1417 = vsel %vm173, %v880, 0
    %1419 = vmatprep.subr.mxu0 0.0
    %1420 = vmatpush1.msra.mxu0 %v1414
    %1421 = vmatprep.subr.mxu0 0.0
    %1422 = vmatpush1.msra.mxu0 0.0
    %1423 = vmatprep.subr.mxu0 0.0
    %1424 = vmatpush1.msra.mxu0 0.0
    %1425 = vmatprep.subr.mxu0 0.0
    %1426 = vmatpush1.msra.mxu0 0.0
    %1427 = vmatprep.subr.mxu0 0.0
    %1428 = vmatpush1.msra.mxu0 0.0
    %1429 = vmatprep.subr.mxu0 0.0
    %1430 = vmatpush1.msra.mxu0 0.0
    %1431 = vmatprep.subr.mxu0 0.0
    %1432 = vmatpush1.msra.mxu0 0.0
    %1433 = vmatprep.subr.mxu0 0.0
    %1434 = vmatpush1.msra.mxu0 0.0
    %1435 = vmatprep.subr.mxu0 0.0
    %1436 = vmatpush1.msra.mxu0 0.0
    %1437 = vmatprep.subr.mxu0 0.0
    %1438 = vmatpush1.msra.mxu0 0.0
    %1439 = vmatprep.subr.mxu0 0.0
    %1440 = vmatpush1.msra.mxu0 0.0
    %1441 = vmatprep.subr.mxu0 0.0
    %1442 = vmatpush1.msra.mxu0 0.0
    %1443 = vmatprep.subr.mxu0 0.0
    %1444 = vmatpush1.msra.mxu0 0.0
    %1445 = vmatprep.subr.mxu0 0.0
    %1446 = vmatpush1.msra.mxu0 0.0
    %1447 = vmatprep.subr.mxu0 0.0
    %1448 = vmatpush1.msra.mxu0 0.0
    %1449 = vmatprep.subr.mxu0 0.0
    %1450 = vmatpush1.msra.mxu0 0.0
    %1451 = vmatprep.subr.mxu0 0.0
    %1452 = vmatpush1.msra.mxu0 0.0
    %1453 = vmatprep.subr.mxu0 0.0
    %1454 = vmatpush1.msra.mxu0 0.0
    %1455 = vmatprep.subr.mxu0 0.0
    %1456 = vmatpush1.msra.mxu0 0.0
    %1457 = vmatprep.subr.mxu0 0.0
    %1458 = vmatpush1.msra.mxu0 0.0
    %1459 = vmatprep.subr.mxu0 0.0
    %1460 = vmatpush1.msra.mxu0 0.0
    %1461 = vmatprep.subr.mxu0 0.0
    %1462 = vmatpush1.msra.mxu0 0.0
    %1463 = vmatprep.subr.mxu0 0.0
    %1464 = vmatpush1.msra.mxu0 0.0
    %1465 = vmatprep.subr.mxu0 0.0
    %1466 = vmatpush1.msra.mxu0 0.0
    %1467 = vmatprep.subr.mxu0 0.0
    %1468 = vmatpush1.msra.mxu0 0.0
    %1469 = vmatprep.subr.mxu0 0.0
    %1470 = vmatpush1.msra.mxu0 0.0
    %1471 = vmatprep.subr.mxu0 0.0
    %1472 = vmatpush1.msra.mxu0 0.0
    %1473 = vmatprep.subr.mxu0 0.0
    %1474 = vmatpush1.msra.mxu0 0.0
    %1475 = vmatprep.subr.mxu0 0.0
    %1476 = vmatpush1.msra.mxu0 0.0
    %1477 = vmatprep.subr.mxu0 0.0
    %1478 = vmatpush1.msra.mxu0 0.0
    %1479 = vmatprep.subr.mxu0 0.0
    %1480 = vmatpush1.msra.mxu0 0.0
    %1481 = vmatprep.subr.mxu0 0.0
    %1482 = vmatpush1.msra.mxu0 0.0
    %1483 = vmatprep.mubr.f32.mxu0 0.0
    %1484 = vmatmul.mubr.f32.gmra.mrb[0].mxu0 %v1417
    %v1485 = vpop.f32.mrb[0].mxu0
    %v1486 = vadd.f32 0.0, %v1485
    %v1487 = vpop.f32.mrb[0].mxu0
    %1488 = vdwg.mxu0
    %1489 = vst.msk [vmem:[#allocation2] sm:$0xff] %vm173, %v954
    %1490 = vst.msk [vmem:[#allocation2 + $0x8] sm:$0xff] %vm173, %v1030
    %1493 = vrot.lane.b32.xlu0 %v1106, 8
    %v1494 = vpop.permute.xlu0 %1493
    %1495 = vrot.lane.b32.xlu0 %v1182, 8
    %v1496 = vpop.permute.xlu0 %1495
    %vm1499 = vcmask 130112
    %1500 = vst.msk [vmem:[#allocation2] sm:$0xff] %vm1499, %v1494
    %1501 = vst.msk [vmem:[#allocation2 + $0x8] sm:$0xff] %vm1499, %v1496
    %1504 = vrot.lane.b32.xlu0 %v1258, 16
    %v1505 = vpop.permute.xlu0 %1504
    %1506 = vrot.lane.b32.xlu0 %v1334, 16
    %v1507 = vpop.permute.xlu0 %1506
    %vm1510 = vcmask 195712
    %1511 = vst.msk [vmem:[#allocation2] sm:$0xff] %vm1510, %v1505
    %1512 = vst.msk [vmem:[#allocation2 + $0x8] sm:$0xff] %vm1510, %v1507
    %1515 = vrot.lane.b32.xlu0 %v1410, 24
    %v1516 = vpop.permute.xlu0 %1515
    %1517 = vrot.lane.b32.xlu0 %v1486, 24
    %v1518 = vpop.permute.xlu0 %1517
    %vm1521 = vcmask 261312
    %1522 = vst.msk [vmem:[#allocation2] sm:$0xff] %vm1521, %v1516
    %1523 = vst.msk [vmem:[#allocation2 + $0x8] sm:$0xff] %vm1521, %v1518
    %v1524 = vld [vmem:[#allocation2] sm:$0xff]
    %v1525 = vld [vmem:[#allocation2 + $0x8] sm:$0xff]
    %v1526 = vld [vmem:[%s1] sm:$0xff]
    %v1527 = vld [vmem:[%s1 + $0x10] sm:$0xff]
    %v1528 = vld [vmem:[%s1 + $0x20] sm:$0xff]
    %v1529 = vld [vmem:[%s1 + $0x30] sm:$0xff]
    %v1530 = vlaneseq
    %v1531 = vshrl.u32 %v1530, 7
    %v1532 = vsub.s32 0, %v1531
    %v1533 = vrot.slane %v25, %v1532
    %1538 = vrot.lane.b32.xlu0 %v1526, 32
    %v1539 = vpop.permute.xlu0 %1538
    %1540 = vrot.lane.b32.xlu0 %v1527, 32
    %v1541 = vpop.permute.xlu0 %1540
    %1542 = vrot.lane.b32.xlu0 %v1528, 32
    %v1543 = vpop.permute.xlu0 %1542
    %1544 = vrot.lane.b32.xlu0 %v1529, 32
    %v1545 = vpop.permute.xlu0 %1544
    %v1551 = vsel %vm28, %v1524, 0
    %v1554 = vsel %vm28, %v1525, 0
    %1556 = vmatprep.subr.mxu0 0.0
    %1557 = vmatpush1.msra.mxu0 %v1539
    %1558 = vmatprep.subr.mxu0 0.0
    %1559 = vmatpush1.msra.mxu0 %v1541
    %1560 = vmatprep.subr.mxu0 0.0
    %1561 = vmatpush1.msra.mxu0 %v1543
    %1562 = vmatprep.subr.mxu0 0.0
    %1563 = vmatpush1.msra.mxu0 %v1545
    %1564 = vmatprep.subr.mxu0 0.0
    %1565 = vmatpush1.msra.mxu0 0.0
    %1566 = vmatprep.subr.mxu0 0.0
    %1567 = vmatpush1.msra.mxu0 0.0
    %1568 = vmatprep.subr.mxu0 0.0
    %1569 = vmatpush1.msra.mxu0 0.0
    %1570 = vmatprep.subr.mxu0 0.0
    %1571 = vmatpush1.msra.mxu0 0.0
    %1572 = vmatprep.subr.mxu0 0.0
    %1573 = vmatpush1.msra.mxu0 0.0
    %1574 = vmatprep.subr.mxu0 0.0
    %1575 = vmatpush1.msra.mxu0 0.0
    %1576 = vmatprep.subr.mxu0 0.0
    %1577 = vmatpush1.msra.mxu0 0.0
    %1578 = vmatprep.subr.mxu0 0.0
    %1579 = vmatpush1.msra.mxu0 0.0
    %1580 = vmatprep.subr.mxu0 0.0
    %1581 = vmatpush1.msra.mxu0 0.0
    %1582 = vmatprep.subr.mxu0 0.0
    %1583 = vmatpush1.msra.mxu0 0.0
    %1584 = vmatprep.subr.mxu0 0.0
    %1585 = vmatpush1.msra.mxu0 0.0
    %1586 = vmatprep.subr.mxu0 0.0
    %1587 = vmatpush1.msra.mxu0 0.0
    %1588 = vmatprep.subr.mxu0 0.0
    %1589 = vmatpush1.msra.mxu0 0.0
    %1590 = vmatprep.subr.mxu0 0.0
    %1591 = vmatpush1.msra.mxu0 0.0
    %1592 = vmatprep.subr.mxu0 0.0
    %1593 = vmatpush1.msra.mxu0 0.0
    %1594 = vmatprep.subr.mxu0 0.0
    %1595 = vmatpush1.msra.mxu0 0.0
    %1596 = vmatprep.subr.mxu0 0.0
    %1597 = vmatpush1.msra.mxu0 0.0
    %1598 = vmatprep.subr.mxu0 0.0
    %1599 = vmatpush1.msra.mxu0 0.0
    %1600 = vmatprep.subr.mxu0 0.0
    %1601 = vmatpush1.msra.mxu0 0.0
    %1602 = vmatprep.subr.mxu0 0.0
    %1603 = vmatpush1.msra.mxu0 0.0
    %1604 = vmatprep.subr.mxu0 0.0
    %1605 = vmatpush1.msra.mxu0 0.0
    %1606 = vmatprep.subr.mxu0 0.0
    %1607 = vmatpush1.msra.mxu0 0.0
    %1608 = vmatprep.subr.mxu0 0.0
    %1609 = vmatpush1.msra.mxu0 0.0
    %1610 = vmatprep.subr.mxu0 0.0
    %1611 = vmatpush1.msra.mxu0 0.0
    %1612 = vmatprep.subr.mxu0 0.0
    %1613 = vmatpush1.msra.mxu0 0.0
    %1614 = vmatprep.subr.mxu0 0.0
    %1615 = vmatpush1.msra.mxu0 0.0
    %1616 = vmatprep.subr.mxu0 0.0
    %1617 = vmatpush1.msra.mxu0 0.0
    %1618 = vmatprep.subr.mxu0 0.0
    %1619 = vmatpush1.msra.mxu0 0.0
    %1620 = vmatprep.mubr.f32.mxu0 0.0
    %1621 = vmatmul.mubr.f32.gmra.mrb[0].mxu0 %v1551
    %v1622 = vpop.f32.mrb[0].mxu0
    %v1623 = vadd.f32 %v1533, %v1622
    %v1624 = vpop.f32.mrb[0].mxu0
    %1625 = vmatprep.mubr.f32.mxu0 0.0
    %1626 = vmatmul.mubr.f32.gmra.mrb[0].mxu0 %v1554
    %v1627 = vpop.f32.mrb[0].mxu0
    %v1628 = vadd.f32 %v1533, %v1627
    %v1629 = vpop.f32.mrb[0].mxu0
    %1630 = vdwg.mxu0
    %v1631 = vadd.f32 %v18, %v1623
    %v1632 = vadd.f32 %v19, %v1628
    %v1633 = vsel %vm28, %v1631, 0.0
    %1634 = vadd.xlane.f32.xlu0 %v1633
    %v1635 = vpop.xlane.xlu0 %1634
    %v1636 = vsel %vm28, %v1632, 0.0
    %1637 = vadd.xlane.f32.xlu0 %v1636
    %v1638 = vpop.xlane.xlu0 %1637
    %v1639 = vmul.f32 %v1635, %v35
    %v1640 = vmul.f32 %v1638, %v35
    %v1641 = vsub.f32 %v1631, %v1639
    %v1642 = vsub.f32 %v1632, %v1640
    %v1643 = vmul.f32 %v1641, %v1641
    %v1644 = vmul.f32 %v1642, %v1642
    %v1645 = vsel %vm28, %v1643, 0.0
    %1646 = vadd.xlane.f32.xlu0 %v1645
    %v1647 = vpop.xlane.xlu0 %1646
    %v1648 = vsel %vm28, %v1644, 0.0
    %1649 = vadd.xlane.f32.xlu0 %v1648
    %v1650 = vpop.xlane.xlu0 %1649
    %v1651 = vmul.f32 %v1647, %v35
    %v1652 = vmul.f32 %v1650, %v35
    %v1653 = vadd.f32 %v1651, 1e-05
    %v1654 = vadd.f32 %v1652, 1e-05
    %v1655 = vrsqrt.pop %v1653
    %v1656 = vrsqrt.pop %v1654
    %v1657 = vmul.f32 %v1641, %v1655
    %v1658 = vmul.f32 %v1642, %v1656
    %v1659 = vlaneseq
    %v1660 = vshrl.u32 %v1659, 7
    %v1661 = vsub.s32 0, %v1660
    %v1662 = vrot.slane %v22, %v1661
    %v1663 = vmul.f32 %v1657, %v1662
    %v1664 = vmul.f32 %v1658, %v1662
    %v1665 = vlaneseq
    %v1666 = vshrl.u32 %v1665, 7
    %v1667 = vsub.s32 0, %v1666
    %v1668 = vrot.slane %v23, %v1667
    %v1669 = vadd.f32 %v1663, %v1668
    %v1670 = vadd.f32 %v1664, %v1668
    %v1671 = vld [vmem:[%s1 + $0x8] sm:$0xff]
    %v1672 = vld [vmem:[%s1 + $0x18] sm:$0xff]
    %v1673 = vld [vmem:[%s1 + $0x28] sm:$0xff]
    %v1674 = vld [vmem:[%s1 + $0x38] sm:$0xff]
    %v1675 = vlaneseq
    %v1676 = vshrl.u32 %v1675, 7
    %v1677 = vsub.s32 0, %v1676
    %v1678 = vrot.slane %v26, %v1677
    %v1680 = vsel %vm28, %v1669, 0
    %v1683 = vsel %vm28, %v1670, 0
    %1685 = vmatprep.subr.mxu0 0.0
    %1686 = vmatpush1.msra.mxu0 %v1671
    %1687 = vmatprep.subr.mxu0 0.0
    %1688 = vmatpush1.msra.mxu0 %v1672
    %1689 = vmatprep.subr.mxu0 0.0
    %1690 = vmatpush1.msra.mxu0 %v1673
    %1691 = vmatprep.subr.mxu0 0.0
    %1692 = vmatpush1.msra.mxu0 %v1674
    %1693 = vmatprep.subr.mxu0 0.0
    %1694 = vmatpush1.msra.mxu0 0.0
    %1695 = vmatprep.subr.mxu0 0.0
    %1696 = vmatpush1.msra.mxu0 0.0
    %1697 = vmatprep.subr.mxu0 0.0
    %1698 = vmatpush1.msra.mxu0 0.0
    %1699 = vmatprep.subr.mxu0 0.0
    %1700 = vmatpush1.msra.mxu0 0.0
    %1701 = vmatprep.subr.mxu0 0.0
    %1702 = vmatpush1.msra.mxu0 0.0
    %1703 = vmatprep.subr.mxu0 0.0
    %1704 = vmatpush1.msra.mxu0 0.0
    %1705 = vmatprep.subr.mxu0 0.0
    %1706 = vmatpush1.msra.mxu0 0.0
    %1707 = vmatprep.subr.mxu0 0.0
    %1708 = vmatpush1.msra.mxu0 0.0
    %1709 = vmatprep.subr.mxu0 0.0
    %1710 = vmatpush1.msra.mxu0 0.0
    %1711 = vmatprep.subr.mxu0 0.0
    %1712 = vmatpush1.msra.mxu0 0.0
    %1713 = vmatprep.subr.mxu0 0.0
    %1714 = vmatpush1.msra.mxu0 0.0
    %1715 = vmatprep.subr.mxu0 0.0
    %1716 = vmatpush1.msra.mxu0 0.0
    %1717 = vmatprep.subr.mxu0 0.0
    %1718 = vmatpush1.msra.mxu0 0.0
    %1719 = vmatprep.subr.mxu0 0.0
    %1720 = vmatpush1.msra.mxu0 0.0
    %1721 = vmatprep.subr.mxu0 0.0
    %1722 = vmatpush1.msra.mxu0 0.0
    %1723 = vmatprep.subr.mxu0 0.0
    %1724 = vmatpush1.msra.mxu0 0.0
    %1725 = vmatprep.subr.mxu0 0.0
    %1726 = vmatpush1.msra.mxu0 0.0
    %1727 = vmatprep.subr.mxu0 0.0
    %1728 = vmatpush1.msra.mxu0 0.0
    %1729 = vmatprep.subr.mxu0 0.0
    %1730 = vmatpush1.msra.mxu0 0.0
    %1731 = vmatprep.subr.mxu0 0.0
    %1732 = vmatpush1.msra.mxu0 0.0
    %1733 = vmatprep.subr.mxu0 0.0
    %1734 = vmatpush1.msra.mxu0 0.0
    %1735 = vmatprep.subr.mxu0 0.0
    %1736 = vmatpush1.msra.mxu0 0.0
    %1737 = vmatprep.subr.mxu0 0.0
    %1738 = vmatpush1.msra.mxu0 0.0
    %1739 = vmatprep.subr.mxu0 0.0
    %1740 = vmatpush1.msra.mxu0 0.0
    %1741 = vmatprep.subr.mxu0 0.0
    %1742 = vmatpush1.msra.mxu0 0.0
    %1743 = vmatprep.subr.mxu0 0.0
    %1744 = vmatpush1.msra.mxu0 0.0
    %1745 = vmatprep.subr.mxu0 0.0
    %1746 = vmatpush1.msra.mxu0 0.0
    %1747 = vmatprep.subr.mxu0 0.0
    %1748 = vmatpush1.msra.mxu0 0.0
    %1749 = vmatprep.mubr.f32.mxu0 0.0
    %1750 = vmatmul.mubr.f32.gmra.mrb[0].mxu0 %v1680
    %v1751 = vpop.f32.mrb[0].mxu0
    %v1752 = vadd.f32 %v1678, %v1751
    %v1753 = vpop.f32.mrb[0].mxu0
    %1754 = vmatprep.mubr.f32.mxu0 0.0
    %1755 = vmatmul.mubr.f32.gmra.mrb[0].mxu0 %v1683
    %v1756 = vpop.f32.mrb[0].mxu0
    %v1757 = vadd.f32 %v1678, %v1756
    %v1758 = vpop.f32.mrb[0].mxu0
    %1759 = vdwg.mxu0
    %v1760 = vmul.f32 %v1752, 0.5
    %v1761 = vmul.f32 %v1757, 0.5
    %v1762 = vmul.f32 %v1752, 0.044715
    %v1763 = vmul.f32 %v1757, 0.044715
    %v1764 = vmul.f32 %v1762, %v1752
    %v1765 = vmul.f32 %v1763, %v1757
    %v1766 = vmul.f32 %v1764, %v1752
    %v1767 = vmul.f32 %v1765, %v1757
    %v1768 = vadd.f32 %v1752, %v1766
    %v1769 = vadd.f32 %v1757, %v1767
    %v1770 = vmul.f32 %v1768, 0.7978846
    %v1771 = vmul.f32 %v1769, 0.7978846
    %v1772 = vtanh.pop %v1770
    %v1773 = vtanh.pop %v1771
    %v1774 = vadd.f32 %v1772, 1.0
    %v1775 = vadd.f32 %v1773, 1.0
    %v1776 = vmul.f32 %v1760, %v1774
    %v1777 = vmul.f32 %v1761, %v1775
    %v1778 = vld [vmem:[%s2] sm:$0xff]
    %v1779 = vld [vmem:[%s2 + $0x8] sm:$0xff]
    %v1780 = vld [vmem:[%s2 + $0x10] sm:$0xff]
    %v1781 = vld [vmem:[%s2 + $0x18] sm:$0xff]
    %v1782 = vld [vmem:[%s2 + $0x20] sm:$0xff]
    %v1783 = vld [vmem:[%s2 + $0x28] sm:$0xff]
    %v1784 = vld [vmem:[%s2 + $0x30] sm:$0xff]
    %v1785 = vld [vmem:[%s2 + $0x38] sm:$0xff]
    %v1786 = vld [vmem:[%s2 + $0x40] sm:$0xff]
    %v1787 = vld [vmem:[%s2 + $0x48] sm:$0xff]
    %v1788 = vld [vmem:[%s2 + $0x50] sm:$0xff]
    %v1789 = vld [vmem:[%s2 + $0x58] sm:$0xff]
    %v1790 = vld [vmem:[%s2 + $0x60] sm:$0xff]
    %v1791 = vld [vmem:[%s2 + $0x68] sm:$0xff]
    %v1792 = vld [vmem:[%s2 + $0x70] sm:$0xff]
    %v1793 = vld [vmem:[%s2 + $0x78] sm:$0xff]
    %v1794 = vlaneseq
    %v1795 = vshrl.u32 %v1794, 7
    %v1796 = vsub.s32 0, %v1795
    %v1797 = vrot.slane %v27, %v1796
    %1798 = vmatprep.subr.mxu0 0.0
    %1799 = vmatpush1.msra.mxu0 %v1778
    %1800 = vmatprep.subr.mxu0 0.0
    %1801 = vmatpush1.msra.mxu0 %v1779
    %1802 = vmatprep.subr.mxu0 0.0
    %1803 = vmatpush1.msra.mxu0 %v1780
    %1804 = vmatprep.subr.mxu0 0.0
    %1805 = vmatpush1.msra.mxu0 %v1781
    %1806 = vmatprep.subr.mxu0 0.0
    %1807 = vmatpush1.msra.mxu0 %v1782
    %1808 = vmatprep.subr.mxu0 0.0
    %1809 = vmatpush1.msra.mxu0 %v1783
    %1810 = vmatprep.subr.mxu0 0.0
    %1811 = vmatpush1.msra.mxu0 %v1784
    %1812 = vmatprep.subr.mxu0 0.0
    %1813 = vmatpush1.msra.mxu0 %v1785
    %1814 = vmatprep.subr.mxu0 0.0
    %1815 = vmatpush1.msra.mxu0 %v1786
    %1816 = vmatprep.subr.mxu0 0.0
    %1817 = vmatpush1.msra.mxu0 %v1787
    %1818 = vmatprep.subr.mxu0 0.0
    %1819 = vmatpush1.msra.mxu0 %v1788
    %1820 = vmatprep.subr.mxu0 0.0
    %1821 = vmatpush1.msra.mxu0 %v1789
    %1822 = vmatprep.subr.mxu0 0.0
    %1823 = vmatpush1.msra.mxu0 %v1790
    %1824 = vmatprep.subr.mxu0 0.0
    %1825 = vmatpush1.msra.mxu0 %v1791
    %1826 = vmatprep.subr.mxu0 0.0
    %1827 = vmatpush1.msra.mxu0 %v1792
    %1828 = vmatprep.subr.mxu0 0.0
    %1829 = vmatpush1.msra.mxu0 %v1793
    %1830 = vmatprep.subr.mxu0 0.0
    %1831 = vmatpush1.msra.mxu0 0.0
    %1832 = vmatprep.subr.mxu0 0.0
    %1833 = vmatpush1.msra.mxu0 0.0
    %1834 = vmatprep.subr.mxu0 0.0
    %1835 = vmatpush1.msra.mxu0 0.0
    %1836 = vmatprep.subr.mxu0 0.0
    %1837 = vmatpush1.msra.mxu0 0.0
    %1838 = vmatprep.subr.mxu0 0.0
    %1839 = vmatpush1.msra.mxu0 0.0
    %1840 = vmatprep.subr.mxu0 0.0
    %1841 = vmatpush1.msra.mxu0 0.0
    %1842 = vmatprep.subr.mxu0 0.0
    %1843 = vmatpush1.msra.mxu0 0.0
    %1844 = vmatprep.subr.mxu0 0.0
    %1845 = vmatpush1.msra.mxu0 0.0
    %1846 = vmatprep.subr.mxu0 0.0
    %1847 = vmatpush1.msra.mxu0 0.0
    %1848 = vmatprep.subr.mxu0 0.0
    %1849 = vmatpush1.msra.mxu0 0.0
    %1850 = vmatprep.subr.mxu0 0.0
    %1851 = vmatpush1.msra.mxu0 0.0
    %1852 = vmatprep.subr.mxu0 0.0
    %1853 = vmatpush1.msra.mxu0 0.0
    %1854 = vmatprep.subr.mxu0 0.0
    %1855 = vmatpush1.msra.mxu0 0.0
    %1856 = vmatprep.subr.mxu0 0.0
    %1857 = vmatpush1.msra.mxu0 0.0
    %1858 = vmatprep.subr.mxu0 0.0
    %1859 = vmatpush1.msra.mxu0 0.0
    %1860 = vmatprep.subr.mxu0 0.0
    %1861 = vmatpush1.msra.mxu0 0.0
    %1862 = vmatprep.mubr.f32.mxu0 0.0
    %1863 = vmatmul.mubr.f32.gmra.mrb[0].mxu0 %v1776
    %v1864 = vpop.f32.mrb[0].mxu0
    %v1865 = vadd.f32 %v1797, %v1864
    %v1866 = vpop.f32.mrb[0].mxu0
    %1867 = vmatprep.mubr.f32.mxu0 0.0
    %1868 = vmatmul.mubr.f32.gmra.mrb[0].mxu0 %v1777
    %v1869 = vpop.f32.mrb[0].mxu0
    %v1870 = vadd.f32 %v1797, %v1869
    %v1871 = vpop.f32.mrb[0].mxu0
    %1872 = vdwg.mxu0
    %v1873 = vadd.f32 %v1631, %v1865
    %v1874 = vadd.f32 %v1632, %v1870
    %1875 = vst.msk [vmem:[#allocation3] sm:$0xff] %vm28, %v1873
    %1876 = vst.msk [vmem:[#allocation3 + $0x8] sm:$0xff] %vm28, %v1874
    // Predicated region
    $region18: #{tpu_custom_call.1} parent=1 // pred_check
      _
    $region19: #{tpu_custom_call.1} parent=1 // pred_check_branch
      %1878 = sbr.rel (0) target = $region21
    $region20: #{tpu_custom_call.1} parent=1 // pred_region
      %s1880 = ssub.s32 256, 256
      %1881 = vsyncadd [#allocation4], %s1880
      %s1882 = sshll.u32 [#allocation3], 4
      %s1883 = int_to_ptr.vmem [resolvable:$true] %s1882
      %1888 = dma.vmem_to_hbm [thread:$0]  %s1883, 256, %s4, [#allocation4], 128, 128, 8
    $region21: #{tpu_custom_call.1} parent=1 // pred_fallthru
      _
    // Predicated region
    $region22: #{tpu_custom_call.1} parent=1 // pred_check
      _
    $region23: #{tpu_custom_call.1} parent=1 // pred_check_branch
      %1890 = sbr.rel (0) target = $region25
    $region24: #{tpu_custom_call.1} parent=1 // pred_region
      %1891 = dma.done [#allocation4], 256
    $region25: #{tpu_custom_call.1} parent=1 // pred_fallthru
      _
    %1892 = vsyncpa [#allocation4], 1

</llo_original>
